<compile_context>
chip_gen: v7x
topology: tpu7x:2x2x1
jax: 0.10.0
libtpu: 0.0.40
codegen_flags: <defaults>
</compile_context>

<pallas_src>
import math

import numpy as np
import jax
import jax.numpy as jnp
from jax.experimental import pallas as pl
from jax.experimental.pallas import tpu as pltpu

PATCH = 32            # SIFTDescriptor patch_size
NUM_ANG = 8           # angular bins
NUM_SPATIAL = 4       # spatial bins (4x4)
DESC = NUM_ANG * NUM_SPATIAL * NUM_SPATIAL   # 128
LANE_PACK = 4         # patches packed along the 128-lane axis
MAX_GROUPS = 32       # groups of 4 patches per grid step -> TB = 128 patches
EPS = 1e-10           # kornia SIFTDescriptor eps
CLIPVAL = 0.2
TWO_PI = 2.0 * math.pi


def _atan2(y, x):
    """atan2 built from basic VPU ops (3-segment reduction + odd Taylor series).

    |err| < ~2e-8 rad; matches torch.atan2 range (-pi, pi].
    """
    ax = jnp.abs(x)
    ay = jnp.abs(y)
    mx = jnp.maximum(ax, ay)
    mn = jnp.minimum(ax, ay)
    t = jnp.where(mx > 0.0, mn / jnp.maximum(mx, 1e-30), 0.0)  # in [0, 1]

    t_lo = math.tan(math.pi / 16.0)
    t_hi = math.tan(3.0 * math.pi / 16.0)
    t0 = jnp.where(t <= t_lo, 0.0,
                   jnp.where(t <= t_hi, math.tan(math.pi / 8.0), 1.0))
    base = jnp.where(t <= t_lo, 0.0,
                     jnp.where(t <= t_hi, math.pi / 8.0, math.pi / 4.0))
    u = (t - t0) / (1.0 + t * t0)
    u2 = u * u
    at = u * (1.0 + u2 * (-1.0 / 3.0 + u2 * (1.0 / 5.0
               + u2 * (-1.0 / 7.0 + u2 * (1.0 / 9.0)))))
    a = base + at
    a = jnp.where(ay > ax, 0.5 * math.pi - a, a)
    a = jnp.where(x < 0.0, math.pi - a, a)
    a = jnp.where(y < 0.0, -a, a)
    return a


def sift_pool_kernel(x_ref, gk_ref, grow_ref, gcolbd_ref, pcolbd_ref,
                     rowpool_ref, out_ref):
    """One grid step = G groups of 4 lane-packed patches (TB = 4G patches).

    x_ref block:  (G, 32, 128)   -- lane block j of group g holds patch 4g+j
    out_ref block:(4G, 128)      -- [4g+oy, bin*16 + j*4 + ox]  (unnormalized)
    """
    G = x_ref.shape[0]
    x3 = x_ref[...]                                     # (G, 32, 128)
    x2 = x3.reshape(G * PATCH, LANE_PACK * PATCH)       # (G*32, 128), layout no-op

    # gx: column central-diff (replicate pad) as ONE lane-dense MXU matmul.
    gx3 = jnp.dot(x2, gcolbd_ref[...],
                  preferred_element_type=jnp.float32).reshape(G, PATCH, LANE_PACK * PATCH)

    # gy: row central-diff, shared (32,32) operator batched over the G groups.
    growb = jnp.broadcast_to(grow_ref[...], (G, PATCH, PATCH))
    gy3 = jax.lax.dot_general(
        growb, x3,
        dimension_numbers=(((2,), (1,)), ((0,), (0,))),
        preferred_element_type=jnp.float32)             # (G, 32, 128)

    # magnitude / orientation (all lane-dense VPU work)
    mag = jnp.sqrt(gx3 * gx3 + gy3 * gy3 + EPS) * gk_ref[...]   # gk broadcasts (32,128)
    ori = _atan2(gy3, gx3 + EPS) + TWO_PI               # in (pi, 3*pi]
    o_big = ori * (NUM_ANG / TWO_PI)                    # in (4, 12]
    bo0f = o_big.astype(jnp.int32).astype(jnp.float32)  # floor (o_big > 0)
    w1 = o_big - bo0f
    bo0 = bo0f.astype(jnp.int32)
    bo0 = jnp.where(bo0 >= NUM_ANG, bo0 - NUM_ANG, bo0)
    w0m = (1.0 - w1) * mag
    w1m = w1 * mag

    pcolbd = pcolbd_ref[...]     # (128, 16)  block-diag column pooling
    rowpool = rowpool_ref[...]   # (4G, 32G)  block-diag row pooling

    # mask reuse: (bo1 == b) <=> (bo0 == (b-1) mod 8): carry previous bin's mask.
    prev = bo0 == (NUM_ANG - 1)
    for b in range(NUM_ANG):
        cur = bo0 == b
        m = jnp.where(cur, w0m, 0.0) + jnp.where(prev, w1m, 0.0)        # (G,32,128)
        t = jnp.dot(m.reshape(G * PATCH, LANE_PACK * PATCH), pcolbd,
                    preferred_element_type=jnp.float32)                 # (G*32, 16)
        pooled = jnp.dot(rowpool, t, preferred_element_type=jnp.float32)  # (4G, 16)
        out_ref[:, b * LANE_PACK * NUM_SPATIAL:(b + 1) * LANE_PACK * NUM_SPATIAL] = pooled
        prev = cur


def sift_norm_kernel(d_ref, o_ref):
    """rootSIFT normalization on lane-dense per-patch rows (TB, 128)."""
    d = d_ref[...]
    ss = jnp.sum(d * d, axis=1, keepdims=True)
    d = d * jax.lax.rsqrt(jnp.maximum(ss, 1e-24))       # F.normalize(p=2, eps=1e-12)
    d = jnp.clip(d, 0.0, CLIPVAL)
    ss = jnp.sum(d * d, axis=1, keepdims=True)
    d = d * jax.lax.rsqrt(jnp.maximum(ss, 1e-24))       # F.normalize(p=2)
    l1 = jnp.sum(jnp.abs(d), axis=1, keepdims=True)
    d = d * (1.0 / jnp.maximum(l1, 1e-12))              # F.normalize(p=1)
    o_ref[...] = jnp.sqrt(d + EPS).astype(o_ref.dtype)  # rootSIFT


def _make_params(G):
    """Fixed operators of kornia.SIFTDescriptor(32, 8, 4) in lane-packed form."""
    # Gaussian weighting window (even-size convention), tiled over 4 lane blocks.
    sigma = PATCH / math.sqrt(2.0)
    xs = np.arange(PATCH, dtype=np.float64) - PATCH // 2
    if PATCH % 2 == 0:
        xs = xs + 0.5
    g1 = np.exp(-(xs ** 2) / (2.0 * sigma ** 2))
    g1 = g1 / g1.sum()
    gk = np.outer(g1, g1).astype(np.float32)                 # (32, 32)
    gk_t = np.tile(gk, (1, LANE_PACK))                       # (32, 128)

    # Separable SIFT pooling: ksize=12, stride=8, pad=3, triangular kernel.
    ksize = 2 * (PATCH // (NUM_SPATIAL + 1))
    stride = PATCH // NUM_SPATIAL
    pad = ksize // 4
    ks_2 = ksize / 2.0
    xc2 = ks_2 - np.abs(np.arange(ksize, dtype=np.float64) + 0.5 - ks_2)
    f = xc2 / ks_2
    P = np.zeros((PATCH, NUM_SPATIAL), dtype=np.float64)
    for o in range(NUM_SPATIAL):
        start = o * stride - pad
        for k in range(ksize):
            p_ = start + k
            if 0 <= p_ < PATCH:                               # zero padding outside
                P[p_, o] += f[k]
    P = P.astype(np.float32)                                  # (32, 4)

    # Central-difference operator ('diff', normalized, replicate padding).
    D = np.zeros((PATCH, PATCH), dtype=np.float32)
    for r in range(PATCH):
        D[r, min(r + 1, PATCH - 1)] += 0.5
        D[r, max(r - 1, 0)] -= 0.5
    grow = D                                                  # gy = grow @ img
    gcol = D.T.copy()                                         # gx = img @ gcol

    # Block-diagonal (over the 4 lane-packed patches) column operators.
    gcol_bd = np.zeros((LANE_PACK * PATCH, LANE_PACK * PATCH), np.float32)
    pcol_bd = np.zeros((LANE_PACK * PATCH, LANE_PACK * NUM_SPATIAL), np.float32)
    for j in range(LANE_PACK):
        gcol_bd[j * PATCH:(j + 1) * PATCH, j * PATCH:(j + 1) * PATCH] = gcol
        pcol_bd[j * PATCH:(j + 1) * PATCH, j * NUM_SPATIAL:(j + 1) * NUM_SPATIAL] = P

    # Block-diagonal (over the G groups in a block) row-pooling operator.
    rowpool = np.zeros((NUM_SPATIAL * G, PATCH * G), np.float32)
    for g in range(G):
        rowpool[g * NUM_SPATIAL:(g + 1) * NUM_SPATIAL, g * PATCH:(g + 1) * PATCH] = P.T

    return (jnp.asarray(gk_t), jnp.asarray(grow), jnp.asarray(gcol_bd),
            jnp.asarray(pcol_bd), jnp.asarray(rowpool))


@jax.jit
def siftnet_forward(x):
    """SiftNet forward: x (B, 1, 32, 32) float32 -> (B, 128) rootSIFT descriptors."""
    assert x.ndim == 4 and x.shape[1:] == (1, PATCH, PATCH)
    B = x.shape[0]
    G = min(MAX_GROUPS, -(-B // LANE_PACK))     # groups of 4 patches per grid step
    TB = LANE_PACK * G                          # patches per grid step
    NB = -(-B // TB)                            # grid size
    Bp = NB * TB

    gk_t, grow, gcol_bd, pcol_bd, rowpool = _make_params(G)

    # pad batch and lane-pack 4 patches side-by-side: (Bp/4, 32, 128)
    xf = x.astype(jnp.float32).reshape(B, PATCH, PATCH)
    if Bp != B:
        xf = jnp.concatenate(
            [xf, jnp.zeros((Bp - B, PATCH, PATCH), jnp.float32)], axis=0)
    xp = xf.reshape(Bp // LANE_PACK, LANE_PACK, PATCH, PATCH)
    xp = jnp.transpose(xp, (0, 2, 1, 3)).reshape(Bp // LANE_PACK, PATCH,
                                                 LANE_PACK * PATCH)

    # ---- kernel A: gradients + orientation binning + spatial pooling ----------
    raw = pl.pallas_call(
        sift_pool_kernel,
        out_shape=jax.ShapeDtypeStruct((NB * NUM_SPATIAL * G, DESC), jnp.float32),
        grid=(NB,),
        in_specs=[
            pl.BlockSpec((G, PATCH, LANE_PACK * PATCH), lambda i: (i, 0, 0)),
            # constants: constant block index -> fetched once by the pipeline
            pl.BlockSpec((PATCH, LANE_PACK * PATCH), lambda i: (0, 0)),
            pl.BlockSpec((PATCH, PATCH), lambda i: (0, 0)),
            pl.BlockSpec((LANE_PACK * PATCH, LANE_PACK * PATCH), lambda i: (0, 0)),
            pl.BlockSpec((LANE_PACK * PATCH, LANE_PACK * NUM_SPATIAL), lambda i: (0, 0)),
            pl.BlockSpec((NUM_SPATIAL * G, PATCH * G), lambda i: (0, 0)),
        ],
        out_specs=pl.BlockSpec((NUM_SPATIAL * G, DESC), lambda i: (i, 0)),
        compiler_params=pltpu.CompilerParams(
            dimension_semantics=("parallel",),
            vmem_limit_bytes=32 * 1024 * 1024),
    )(xp, gk_t, grow, gcol_bd, pcol_bd, rowpool)

    # layout plumbing (wrapper-side): [4g+oy, b*16+j*4+ox] -> [patch, b*16+oy*4+ox]
    desc = raw.reshape(NB, G, NUM_SPATIAL, NUM_ANG, LANE_PACK, NUM_SPATIAL)
    desc = jnp.transpose(desc, (0, 1, 4, 3, 2, 5)).reshape(Bp, DESC)

    # ---- kernel B: L2 -> clip(0.2) -> L2 -> L1 -> sqrt (rootSIFT) --------------
    out = pl.pallas_call(
        sift_norm_kernel,
        out_shape=jax.ShapeDtypeStruct((Bp, DESC), jnp.float32),
        grid=(NB,),
        in_specs=[pl.BlockSpec((TB, DESC), lambda i: (i, 0))],
        out_specs=pl.BlockSpec((TB, DESC), lambda i: (i, 0)),
        compiler_params=pltpu.CompilerParams(dimension_semantics=("parallel",)),
    )(desc)

    # encode(): .view(B, -1, 1, 1)  then decode(): .view(B, -1)  -> (B, 128)
    return out[:B]


if __name__ == "__main__":
    key = jax.random.PRNGKey(0)
    x = jax.random.normal(key, (2, 1, PATCH, PATCH), dtype=jnp.float32)

    out = jax.block_until_ready(siftnet_forward(x))

    assert out.shape == (2, DESC)
    assert bool(jnp.all(jnp.isfinite(out)))
    # rootSIFT descriptors are (nearly) unit L2-norm — cheap sanity check.
    norms = jnp.sqrt(jnp.sum(out * out, axis=1))
    assert bool(jnp.all(jnp.abs(norms - 1.0) < 1e-3))
    print("KERNEL_OK")
</pallas_src>

<mosaic_0001>
module attributes {stable_mosaic.version = 11 : i64} {
  func.func @sift_pool_kernel(%arg0: i32, %arg1: memref<1x32x128xf32, #tpu.memory_space<vmem>>, %arg2: memref<32x128xf32, #tpu.memory_space<vmem>>, %arg3: memref<32x32xf32, #tpu.memory_space<vmem>>, %arg4: memref<128x128xf32, #tpu.memory_space<vmem>>, %arg5: memref<128x16xf32, #tpu.memory_space<vmem>>, %arg6: memref<4x32xf32, #tpu.memory_space<vmem>>, %arg7: memref<4x128xf32, #tpu.memory_space<vmem>>) attributes {dimension_semantics = [#tpu.dimension_semantics<parallel>], iteration_bounds = array<i64: 1>, scalar_prefetch = 0 : i64, scratch_operands = 0 : i64, tpu.core_type = #tpu.core_type<tc>, window_params = [{transform_indices = @transform_0, window_bounds = array<i64: 1, 32, 128>}, {pipeline_mode = #tpu.pipeline_mode<synchronous>, transform_indices = @transform_1, window_bounds = array<i64: 32, 128>}, {pipeline_mode = #tpu.pipeline_mode<synchronous>, transform_indices = @transform_2, window_bounds = array<i64: 32, 32>}, {pipeline_mode = #tpu.pipeline_mode<synchronous>, transform_indices = @transform_3, window_bounds = array<i64: 128, 128>}, {pipeline_mode = #tpu.pipeline_mode<synchronous>, transform_indices = @transform_4, window_bounds = array<i64: 128, 16>}, {pipeline_mode = #tpu.pipeline_mode<synchronous>, transform_indices = @transform_5, window_bounds = array<i64: 4, 32>}, {transform_indices = @transform_6, window_bounds = array<i64: 4, 128>}]} {
    %c0 = arith.constant 0 : index
    %c0_0 = arith.constant 0 : index
    %c0_1 = arith.constant 0 : index
    %0 = vector.load %arg1[%c0, %c0_0, %c0_1] : memref<1x32x128xf32, #tpu.memory_space<vmem>>, vector<1x32x128xf32>
    %1 = vector.shape_cast %0 : vector<1x32x128xf32> to vector<32x128xf32>
    %c0_2 = arith.constant 0 : index
    %c0_3 = arith.constant 0 : index
    %2 = vector.load %arg4[%c0_2, %c0_3] : memref<128x128xf32, #tpu.memory_space<vmem>>, vector<128x128xf32>
    %cst = arith.constant dense<0.000000e+00> : vector<32x128xf32>
    %3 = tpu.matmul %1, %2, %cst {dimension_numbers = #tpu.dot_dimension_numbers<[1], [0], [0], [1], [0, 0, 1, 1], [], []>} : vector<32x128xf32>, vector<128x128xf32>, vector<32x128xf32> -> vector<32x128xf32>
    %4 = vector.shape_cast %3 : vector<32x128xf32> to vector<1x32x128xf32>
    %c0_4 = arith.constant 0 : index
    %c0_5 = arith.constant 0 : index
    %5 = vector.load %arg3[%c0_4, %c0_5] : memref<32x32xf32, #tpu.memory_space<vmem>>, vector<32x32xf32>
    %6 = vector.shape_cast %5 : vector<32x32xf32> to vector<1x32x32xf32>
    %cst_6 = arith.constant dense<0.000000e+00> : vector<1x32x128xf32>
    %7 = tpu.matmul %6, %0, %cst_6 {dimension_numbers = #tpu.dot_dimension_numbers<[2], [1], [1], [2], [0, 0, 0, 1, 1, 2], [0], [0]>} : vector<1x32x32xf32>, vector<1x32x128xf32>, vector<1x32x128xf32> -> vector<1x32x128xf32>
    %8 = arith.mulf %4, %4 : vector<1x32x128xf32>
    %9 = arith.mulf %7, %7 : vector<1x32x128xf32>
    %10 = arith.addf %8, %9 : vector<1x32x128xf32>
    %cst_7 = arith.constant 1.000000e-10 : f32
    %11 = vector.broadcast %cst_7 : f32 to vector<1x32x128xf32>
    %12 = arith.addf %10, %11 : vector<1x32x128xf32>
    %13 = math.sqrt %12 : vector<1x32x128xf32>
    %c0_8 = arith.constant 0 : index
    %c0_9 = arith.constant 0 : index
    %14 = vector.load %arg2[%c0_8, %c0_9] : memref<32x128xf32, #tpu.memory_space<vmem>>, vector<32x128xf32>
    %15 = vector.shape_cast %14 : vector<32x128xf32> to vector<1x32x128xf32>
    %16 = arith.mulf %13, %15 : vector<1x32x128xf32>
    %cst_10 = arith.constant 1.000000e-10 : f32
    %17 = vector.broadcast %cst_10 : f32 to vector<1x32x128xf32>
    %18 = arith.addf %4, %17 : vector<1x32x128xf32>
    %19 = math.absf %18 : vector<1x32x128xf32>
    %20 = math.absf %7 : vector<1x32x128xf32>
    %21 = arith.maximumf %19, %20 : vector<1x32x128xf32>
    %22 = arith.minimumf %19, %20 : vector<1x32x128xf32>
    %cst_11 = arith.constant 0.000000e+00 : f32
    %23 = vector.broadcast %cst_11 : f32 to vector<1x32x128xf32>
    %24 = arith.cmpf ogt, %21, %23 : vector<1x32x128xf32>
    %cst_12 = arith.constant 1.000000e-30 : f32
    %25 = vector.broadcast %cst_12 : f32 to vector<1x32x128xf32>
    %26 = arith.maximumf %21, %25 : vector<1x32x128xf32>
    %27 = arith.divf %22, %26 : vector<1x32x128xf32>
    %cst_13 = arith.constant 0.000000e+00 : f32
    %28 = vector.broadcast %cst_13 : f32 to vector<1x32x128xf32>
    %29 = arith.select %24, %27, %28 : vector<1x32x128xi1>, vector<1x32x128xf32>
    %cst_14 = arith.constant 0.198912367 : f32
    %30 = vector.broadcast %cst_14 : f32 to vector<1x32x128xf32>
    %31 = arith.cmpf ole, %29, %30 : vector<1x32x128xf32>
    %cst_15 = arith.constant 0.668178617 : f32
    %32 = vector.broadcast %cst_15 : f32 to vector<1x32x128xf32>
    %33 = arith.cmpf ole, %29, %32 : vector<1x32x128xf32>
    %cst_16 = arith.constant 0.414213568 : f32
    %cst_17 = arith.constant 1.000000e+00 : f32
    %34 = vector.broadcast %cst_16 : f32 to vector<1x32x128xf32>
    %35 = vector.broadcast %cst_17 : f32 to vector<1x32x128xf32>
    %36 = arith.select %33, %34, %35 : vector<1x32x128xi1>, vector<1x32x128xf32>
    %cst_18 = arith.constant 0.000000e+00 : f32
    %37 = vector.broadcast %cst_18 : f32 to vector<1x32x128xf32>
    %38 = arith.select %31, %37, %36 : vector<1x32x128xi1>, vector<1x32x128xf32>
    %cst_19 = arith.constant 0.198912367 : f32
    %39 = vector.broadcast %cst_19 : f32 to vector<1x32x128xf32>
    %40 = arith.cmpf ole, %29, %39 : vector<1x32x128xf32>
    %cst_20 = arith.constant 0.668178617 : f32
    %41 = vector.broadcast %cst_20 : f32 to vector<1x32x128xf32>
    %42 = arith.cmpf ole, %29, %41 : vector<1x32x128xf32>
    %cst_21 = arith.constant 0.392699093 : f32
    %cst_22 = arith.constant 0.785398185 : f32
    %43 = vector.broadcast %cst_21 : f32 to vector<1x32x128xf32>
    %44 = vector.broadcast %cst_22 : f32 to vector<1x32x128xf32>
    %45 = arith.select %42, %43, %44 : vector<1x32x128xi1>, vector<1x32x128xf32>
    %cst_23 = arith.constant 0.000000e+00 : f32
    %46 = vector.broadcast %cst_23 : f32 to vector<1x32x128xf32>
    %47 = arith.select %40, %46, %45 : vector<1x32x128xi1>, vector<1x32x128xf32>
    %48 = arith.subf %29, %38 : vector<1x32x128xf32>
    %49 = arith.mulf %29, %38 : vector<1x32x128xf32>
    %cst_24 = arith.constant 1.000000e+00 : f32
    %50 = vector.broadcast %cst_24 : f32 to vector<1x32x128xf32>
    %51 = arith.addf %50, %49 : vector<1x32x128xf32>
    %52 = arith.divf %48, %51 : vector<1x32x128xf32>
    %53 = arith.mulf %52, %52 : vector<1x32x128xf32>
    %cst_25 = arith.constant 0.111111112 : f32
    %54 = vector.broadcast %cst_25 : f32 to vector<1x32x128xf32>
    %55 = arith.mulf %53, %54 : vector<1x32x128xf32>
    %cst_26 = arith.constant -0.142857149 : f32
    %56 = vector.broadcast %cst_26 : f32 to vector<1x32x128xf32>
    %57 = arith.addf %56, %55 : vector<1x32x128xf32>
    %58 = arith.mulf %53, %57 : vector<1x32x128xf32>
    %cst_27 = arith.constant 2.000000e-01 : f32
    %59 = vector.broadcast %cst_27 : f32 to vector<1x32x128xf32>
    %60 = arith.addf %59, %58 : vector<1x32x128xf32>
    %61 = arith.mulf %53, %60 : vector<1x32x128xf32>
    %cst_28 = arith.constant -0.333333343 : f32
    %62 = vector.broadcast %cst_28 : f32 to vector<1x32x128xf32>
    %63 = arith.addf %62, %61 : vector<1x32x128xf32>
    %64 = arith.mulf %53, %63 : vector<1x32x128xf32>
    %cst_29 = arith.constant 1.000000e+00 : f32
    %65 = vector.broadcast %cst_29 : f32 to vector<1x32x128xf32>
    %66 = arith.addf %65, %64 : vector<1x32x128xf32>
    %67 = arith.mulf %52, %66 : vector<1x32x128xf32>
    %68 = arith.addf %47, %67 : vector<1x32x128xf32>
    %69 = arith.cmpf ogt, %20, %19 : vector<1x32x128xf32>
    %cst_30 = arith.constant 1.57079637 : f32
    %70 = vector.broadcast %cst_30 : f32 to vector<1x32x128xf32>
    %71 = arith.subf %70, %68 : vector<1x32x128xf32>
    %72 = arith.select %69, %71, %68 : vector<1x32x128xi1>, vector<1x32x128xf32>
    %cst_31 = arith.constant 0.000000e+00 : f32
    %73 = vector.broadcast %cst_31 : f32 to vector<1x32x128xf32>
    %74 = arith.cmpf olt, %18, %73 : vector<1x32x128xf32>
    %cst_32 = arith.constant 3.14159274 : f32
    %75 = vector.broadcast %cst_32 : f32 to vector<1x32x128xf32>
    %76 = arith.subf %75, %72 : vector<1x32x128xf32>
    %77 = arith.select %74, %76, %72 : vector<1x32x128xi1>, vector<1x32x128xf32>
    %cst_33 = arith.constant 0.000000e+00 : f32
    %78 = vector.broadcast %cst_33 : f32 to vector<1x32x128xf32>
    %79 = arith.cmpf olt, %7, %78 : vector<1x32x128xf32>
    %cst_34 = arith.constant 0.000000e+00 : f32
    %80 = vector.broadcast %cst_34 : f32 to vector<1x32x128xf32>
    %81 = arith.subf %80, %77 : vector<1x32x128xf32>
    %82 = arith.select %79, %81, %77 : vector<1x32x128xi1>, vector<1x32x128xf32>
    %cst_35 = arith.constant 6.28318548 : f32
    %83 = vector.broadcast %cst_35 : f32 to vector<1x32x128xf32>
    %84 = arith.addf %82, %83 : vector<1x32x128xf32>
    %cst_36 = arith.constant 1.27323949 : f32
    %85 = vector.broadcast %cst_36 : f32 to vector<1x32x128xf32>
    %86 = arith.mulf %84, %85 : vector<1x32x128xf32>
    %87 = arith.fptosi %86 : vector<1x32x128xf32> to vector<1x32x128xi32>
    %88 = arith.sitofp %87 : vector<1x32x128xi32> to vector<1x32x128xf32>
    %89 = arith.subf %86, %88 : vector<1x32x128xf32>
    %90 = arith.fptosi %88 : vector<1x32x128xf32> to vector<1x32x128xi32>
    %c8_i32 = arith.constant 8 : i32
    %91 = vector.broadcast %c8_i32 : i32 to vector<1x32x128xi32>
    %92 = arith.cmpi sge, %90, %91 : vector<1x32x128xi32>
    %c8_i32_37 = arith.constant 8 : i32
    %93 = vector.broadcast %c8_i32_37 : i32 to vector<1x32x128xi32>
    %94 = arith.subi %90, %93 : vector<1x32x128xi32>
    %95 = arith.select %92, %94, %90 : vector<1x32x128xi1>, vector<1x32x128xi32>
    %cst_38 = arith.constant 1.000000e+00 : f32
    %96 = vector.broadcast %cst_38 : f32 to vector<1x32x128xf32>
    %97 = arith.subf %96, %89 : vector<1x32x128xf32>
    %98 = arith.mulf %97, %16 : vector<1x32x128xf32>
    %99 = arith.mulf %89, %16 : vector<1x32x128xf32>
    %c0_39 = arith.constant 0 : index
    %c0_40 = arith.constant 0 : index
    %100 = vector.load %arg5[%c0_39, %c0_40] : memref<128x16xf32, #tpu.memory_space<vmem>>, vector<128x16xf32>
    %c0_41 = arith.constant 0 : index
    %c0_42 = arith.constant 0 : index
    %101 = vector.load %arg6[%c0_41, %c0_42] : memref<4x32xf32, #tpu.memory_space<vmem>>, vector<4x32xf32>
    %c7_i32 = arith.constant 7 : i32
    %102 = vector.broadcast %c7_i32 : i32 to vector<1x32x128xi32>
    %103 = arith.cmpi eq, %95, %102 : vector<1x32x128xi32>
    %c0_i32 = arith.constant 0 : i32
    %104 = vector.broadcast %c0_i32 : i32 to vector<1x32x128xi32>
    %105 = arith.cmpi eq, %95, %104 : vector<1x32x128xi32>
    %cst_43 = arith.constant 0.000000e+00 : f32
    %106 = vector.broadcast %cst_43 : f32 to vector<1x32x128xf32>
    %107 = arith.select %105, %98, %106 : vector<1x32x128xi1>, vector<1x32x128xf32>
    %cst_44 = arith.constant 0.000000e+00 : f32
    %108 = vector.broadcast %cst_44 : f32 to vector<1x32x128xf32>
    %109 = arith.select %103, %99, %108 : vector<1x32x128xi1>, vector<1x32x128xf32>
    %110 = arith.addf %107, %109 : vector<1x32x128xf32>
    %111 = vector.shape_cast %110 : vector<1x32x128xf32> to vector<32x128xf32>
    %cst_45 = arith.constant dense<0.000000e+00> : vector<32x16xf32>
    %112 = tpu.matmul %111, %100, %cst_45 {dimension_numbers = #tpu.dot_dimension_numbers<[1], [0], [0], [1], [0, 0, 1, 1], [], []>} : vector<32x128xf32>, vector<128x16xf32>, vector<32x16xf32> -> vector<32x16xf32>
    %cst_46 = arith.constant dense<0.000000e+00> : vector<4x16xf32>
    %113 = tpu.matmul %101, %112, %cst_46 {dimension_numbers = #tpu.dot_dimension_numbers<[1], [0], [0], [1], [0, 0, 1, 1], [], []>} : vector<4x32xf32>, vector<32x16xf32>, vector<4x16xf32> -> vector<4x16xf32>
    %c0_47 = arith.constant 0 : index
    %c0_48 = arith.constant 0 : index
    %114 = vector.load %arg7[%c0_47, %c0_48] : memref<4x128xf32, #tpu.memory_space<vmem>>, vector<4x16xf32>
    tpu.vector_store %arg7[%c0_47, %c0_48], %113 {strides = array<i32>} : memref<4x128xf32, #tpu.memory_space<vmem>>, vector<4x16xf32>,
    %c1_i32 = arith.constant 1 : i32
    %115 = vector.broadcast %c1_i32 : i32 to vector<1x32x128xi32>
    %116 = arith.cmpi eq, %95, %115 : vector<1x32x128xi32>
    %cst_49 = arith.constant 0.000000e+00 : f32
    %117 = vector.broadcast %cst_49 : f32 to vector<1x32x128xf32>
    %118 = arith.select %116, %98, %117 : vector<1x32x128xi1>, vector<1x32x128xf32>
    %cst_50 = arith.constant 0.000000e+00 : f32
    %119 = vector.broadcast %cst_50 : f32 to vector<1x32x128xf32>
    %120 = arith.select %105, %99, %119 : vector<1x32x128xi1>, vector<1x32x128xf32>
    %121 = arith.addf %118, %120 : vector<1x32x128xf32>
    %122 = vector.shape_cast %121 : vector<1x32x128xf32> to vector<32x128xf32>
    %cst_51 = arith.constant dense<0.000000e+00> : vector<32x16xf32>
    %123 = tpu.matmul %122, %100, %cst_51 {dimension_numbers = #tpu.dot_dimension_numbers<[1], [0], [0], [1], [0, 0, 1, 1], [], []>} : vector<32x128xf32>, vector<128x16xf32>, vector<32x16xf32> -> vector<32x16xf32>
    %cst_52 = arith.constant dense<0.000000e+00> : vector<4x16xf32>
    %124 = tpu.matmul %101, %123, %cst_52 {dimension_numbers = #tpu.dot_dimension_numbers<[1], [0], [0], [1], [0, 0, 1, 1], [], []>} : vector<4x32xf32>, vector<32x16xf32>, vector<4x16xf32> -> vector<4x16xf32>
    %c0_53 = arith.constant 0 : index
    %c16 = arith.constant 16 : index
    %125 = vector.load %arg7[%c0_53, %c16] : memref<4x128xf32, #tpu.memory_space<vmem>>, vector<4x16xf32>
    tpu.vector_store %arg7[%c0_53, %c16], %124 {strides = array<i32>} : memref<4x128xf32, #tpu.memory_space<vmem>>, vector<4x16xf32>,
    %c2_i32 = arith.constant 2 : i32
    %126 = vector.broadcast %c2_i32 : i32 to vector<1x32x128xi32>
    %127 = arith.cmpi eq, %95, %126 : vector<1x32x128xi32>
    %cst_54 = arith.constant 0.000000e+00 : f32
    %128 = vector.broadcast %cst_54 : f32 to vector<1x32x128xf32>
    %129 = arith.select %127, %98, %128 : vector<1x32x128xi1>, vector<1x32x128xf32>
    %cst_55 = arith.constant 0.000000e+00 : f32
    %130 = vector.broadcast %cst_55 : f32 to vector<1x32x128xf32>
    %131 = arith.select %116, %99, %130 : vector<1x32x128xi1>, vector<1x32x128xf32>
    %132 = arith.addf %129, %131 : vector<1x32x128xf32>
    %133 = vector.shape_cast %132 : vector<1x32x128xf32> to vector<32x128xf32>
    %cst_56 = arith.constant dense<0.000000e+00> : vector<32x16xf32>
    %134 = tpu.matmul %133, %100, %cst_56 {dimension_numbers = #tpu.dot_dimension_numbers<[1], [0], [0], [1], [0, 0, 1, 1], [], []>} : vector<32x128xf32>, vector<128x16xf32>, vector<32x16xf32> -> vector<32x16xf32>
    %cst_57 = arith.constant dense<0.000000e+00> : vector<4x16xf32>
    %135 = tpu.matmul %101, %134, %cst_57 {dimension_numbers = #tpu.dot_dimension_numbers<[1], [0], [0], [1], [0, 0, 1, 1], [], []>} : vector<4x32xf32>, vector<32x16xf32>, vector<4x16xf32> -> vector<4x16xf32>
    %c0_58 = arith.constant 0 : index
    %c32 = arith.constant 32 : index
    %136 = vector.load %arg7[%c0_58, %c32] : memref<4x128xf32, #tpu.memory_space<vmem>>, vector<4x16xf32>
    tpu.vector_store %arg7[%c0_58, %c32], %135 {strides = array<i32>} : memref<4x128xf32, #tpu.memory_space<vmem>>, vector<4x16xf32>,
    %c3_i32 = arith.constant 3 : i32
    %137 = vector.broadcast %c3_i32 : i32 to vector<1x32x128xi32>
    %138 = arith.cmpi eq, %95, %137 : vector<1x32x128xi32>
    %cst_59 = arith.constant 0.000000e+00 : f32
    %139 = vector.broadcast %cst_59 : f32 to vector<1x32x128xf32>
    %140 = arith.select %138, %98, %139 : vector<1x32x128xi1>, vector<1x32x128xf32>
    %cst_60 = arith.constant 0.000000e+00 : f32
    %141 = vector.broadcast %cst_60 : f32 to vector<1x32x128xf32>
    %142 = arith.select %127, %99, %141 : vector<1x32x128xi1>, vector<1x32x128xf32>
    %143 = arith.addf %140, %142 : vector<1x32x128xf32>
    %144 = vector.shape_cast %143 : vector<1x32x128xf32> to vector<32x128xf32>
    %cst_61 = arith.constant dense<0.000000e+00> : vector<32x16xf32>
    %145 = tpu.matmul %144, %100, %cst_61 {dimension_numbers = #tpu.dot_dimension_numbers<[1], [0], [0], [1], [0, 0, 1, 1], [], []>} : vector<32x128xf32>, vector<128x16xf32>, vector<32x16xf32> -> vector<32x16xf32>
    %cst_62 = arith.constant dense<0.000000e+00> : vector<4x16xf32>
    %146 = tpu.matmul %101, %145, %cst_62 {dimension_numbers = #tpu.dot_dimension_numbers<[1], [0], [0], [1], [0, 0, 1, 1], [], []>} : vector<4x32xf32>, vector<32x16xf32>, vector<4x16xf32> -> vector<4x16xf32>
    %c0_63 = arith.constant 0 : index
    %c48 = arith.constant 48 : index
    %147 = vector.load %arg7[%c0_63, %c48] : memref<4x128xf32, #tpu.memory_space<vmem>>, vector<4x16xf32>
    tpu.vector_store %arg7[%c0_63, %c48], %146 {strides = array<i32>} : memref<4x128xf32, #tpu.memory_space<vmem>>, vector<4x16xf32>,
    %c4_i32 = arith.constant 4 : i32
    %148 = vector.broadcast %c4_i32 : i32 to vector<1x32x128xi32>
    %149 = arith.cmpi eq, %95, %148 : vector<1x32x128xi32>
    %cst_64 = arith.constant 0.000000e+00 : f32
    %150 = vector.broadcast %cst_64 : f32 to vector<1x32x128xf32>
    %151 = arith.select %149, %98, %150 : vector<1x32x128xi1>, vector<1x32x128xf32>
    %cst_65 = arith.constant 0.000000e+00 : f32
    %152 = vector.broadcast %cst_65 : f32 to vector<1x32x128xf32>
    %153 = arith.select %138, %99, %152 : vector<1x32x128xi1>, vector<1x32x128xf32>
    %154 = arith.addf %151, %153 : vector<1x32x128xf32>
    %155 = vector.shape_cast %154 : vector<1x32x128xf32> to vector<32x128xf32>
    %cst_66 = arith.constant dense<0.000000e+00> : vector<32x16xf32>
    %156 = tpu.matmul %155, %100, %cst_66 {dimension_numbers = #tpu.dot_dimension_numbers<[1], [0], [0], [1], [0, 0, 1, 1], [], []>} : vector<32x128xf32>, vector<128x16xf32>, vector<32x16xf32> -> vector<32x16xf32>
    %cst_67 = arith.constant dense<0.000000e+00> : vector<4x16xf32>
    %157 = tpu.matmul %101, %156, %cst_67 {dimension_numbers = #tpu.dot_dimension_numbers<[1], [0], [0], [1], [0, 0, 1, 1], [], []>} : vector<4x32xf32>, vector<32x16xf32>, vector<4x16xf32> -> vector<4x16xf32>
    %c0_68 = arith.constant 0 : index
    %c64 = arith.constant 64 : index
    %158 = vector.load %arg7[%c0_68, %c64] : memref<4x128xf32, #tpu.memory_space<vmem>>, vector<4x16xf32>
    tpu.vector_store %arg7[%c0_68, %c64], %157 {strides = array<i32>} : memref<4x128xf32, #tpu.memory_space<vmem>>, vector<4x16xf32>,
    %c5_i32 = arith.constant 5 : i32
    %159 = vector.broadcast %c5_i32 : i32 to vector<1x32x128xi32>
    %160 = arith.cmpi eq, %95, %159 : vector<1x32x128xi32>
    %cst_69 = arith.constant 0.000000e+00 : f32
    %161 = vector.broadcast %cst_69 : f32 to vector<1x32x128xf32>
    %162 = arith.select %160, %98, %161 : vector<1x32x128xi1>, vector<1x32x128xf32>
    %cst_70 = arith.constant 0.000000e+00 : f32
    %163 = vector.broadcast %cst_70 : f32 to vector<1x32x128xf32>
    %164 = arith.select %149, %99, %163 : vector<1x32x128xi1>, vector<1x32x128xf32>
    %165 = arith.addf %162, %164 : vector<1x32x128xf32>
    %166 = vector.shape_cast %165 : vector<1x32x128xf32> to vector<32x128xf32>
    %cst_71 = arith.constant dense<0.000000e+00> : vector<32x16xf32>
    %167 = tpu.matmul %166, %100, %cst_71 {dimension_numbers = #tpu.dot_dimension_numbers<[1], [0], [0], [1], [0, 0, 1, 1], [], []>} : vector<32x128xf32>, vector<128x16xf32>, vector<32x16xf32> -> vector<32x16xf32>
    %cst_72 = arith.constant dense<0.000000e+00> : vector<4x16xf32>
    %168 = tpu.matmul %101, %167, %cst_72 {dimension_numbers = #tpu.dot_dimension_numbers<[1], [0], [0], [1], [0, 0, 1, 1], [], []>} : vector<4x32xf32>, vector<32x16xf32>, vector<4x16xf32> -> vector<4x16xf32>
    %c0_73 = arith.constant 0 : index
    %c80 = arith.constant 80 : index
    %169 = vector.load %arg7[%c0_73, %c80] : memref<4x128xf32, #tpu.memory_space<vmem>>, vector<4x16xf32>
    tpu.vector_store %arg7[%c0_73, %c80], %168 {strides = array<i32>} : memref<4x128xf32, #tpu.memory_space<vmem>>, vector<4x16xf32>,
    %c6_i32 = arith.constant 6 : i32
    %170 = vector.broadcast %c6_i32 : i32 to vector<1x32x128xi32>
    %171 = arith.cmpi eq, %95, %170 : vector<1x32x128xi32>
    %cst_74 = arith.constant 0.000000e+00 : f32
    %172 = vector.broadcast %cst_74 : f32 to vector<1x32x128xf32>
    %173 = arith.select %171, %98, %172 : vector<1x32x128xi1>, vector<1x32x128xf32>
    %cst_75 = arith.constant 0.000000e+00 : f32
    %174 = vector.broadcast %cst_75 : f32 to vector<1x32x128xf32>
    %175 = arith.select %160, %99, %174 : vector<1x32x128xi1>, vector<1x32x128xf32>
    %176 = arith.addf %173, %175 : vector<1x32x128xf32>
    %177 = vector.shape_cast %176 : vector<1x32x128xf32> to vector<32x128xf32>
    %cst_76 = arith.constant dense<0.000000e+00> : vector<32x16xf32>
    %178 = tpu.matmul %177, %100, %cst_76 {dimension_numbers = #tpu.dot_dimension_numbers<[1], [0], [0], [1], [0, 0, 1, 1], [], []>} : vector<32x128xf32>, vector<128x16xf32>, vector<32x16xf32> -> vector<32x16xf32>
    %cst_77 = arith.constant dense<0.000000e+00> : vector<4x16xf32>
    %179 = tpu.matmul %101, %178, %cst_77 {dimension_numbers = #tpu.dot_dimension_numbers<[1], [0], [0], [1], [0, 0, 1, 1], [], []>} : vector<4x32xf32>, vector<32x16xf32>, vector<4x16xf32> -> vector<4x16xf32>
    %c0_78 = arith.constant 0 : index
    %c96 = arith.constant 96 : index
    %180 = vector.load %arg7[%c0_78, %c96] : memref<4x128xf32, #tpu.memory_space<vmem>>, vector<4x16xf32>
    tpu.vector_store %arg7[%c0_78, %c96], %179 {strides = array<i32>} : memref<4x128xf32, #tpu.memory_space<vmem>>, vector<4x16xf32>,
    %c7_i32_79 = arith.constant 7 : i32
    %181 = vector.broadcast %c7_i32_79 : i32 to vector<1x32x128xi32>
    %182 = arith.cmpi eq, %95, %181 : vector<1x32x128xi32>
    %cst_80 = arith.constant 0.000000e+00 : f32
    %183 = vector.broadcast %cst_80 : f32 to vector<1x32x128xf32>
    %184 = arith.select %182, %98, %183 : vector<1x32x128xi1>, vector<1x32x128xf32>
    %cst_81 = arith.constant 0.000000e+00 : f32
    %185 = vector.broadcast %cst_81 : f32 to vector<1x32x128xf32>
    %186 = arith.select %171, %99, %185 : vector<1x32x128xi1>, vector<1x32x128xf32>
    %187 = arith.addf %184, %186 : vector<1x32x128xf32>
    %188 = vector.shape_cast %187 : vector<1x32x128xf32> to vector<32x128xf32>
    %cst_82 = arith.constant dense<0.000000e+00> : vector<32x16xf32>
    %189 = tpu.matmul %188, %100, %cst_82 {dimension_numbers = #tpu.dot_dimension_numbers<[1], [0], [0], [1], [0, 0, 1, 1], [], []>} : vector<32x128xf32>, vector<128x16xf32>, vector<32x16xf32> -> vector<32x16xf32>
    %cst_83 = arith.constant dense<0.000000e+00> : vector<4x16xf32>
    %190 = tpu.matmul %101, %189, %cst_83 {dimension_numbers = #tpu.dot_dimension_numbers<[1], [0], [0], [1], [0, 0, 1, 1], [], []>} : vector<4x32xf32>, vector<32x16xf32>, vector<4x16xf32> -> vector<4x16xf32>
    %c0_84 = arith.constant 0 : index
    %c112 = arith.constant 112 : index
    %191 = vector.load %arg7[%c0_84, %c112] : memref<4x128xf32, #tpu.memory_space<vmem>>, vector<4x16xf32>
    tpu.vector_store %arg7[%c0_84, %c112], %190 {strides = array<i32>} : memref<4x128xf32, #tpu.memory_space<vmem>>, vector<4x16xf32>,
    return
  }
  func.func @transform_0(%arg0: i32) -> (i32, i32, i32) {
    %c0_i32 = arith.constant 0 : i32
    %c0_i32_0 = arith.constant 0 : i32
    %c0_i32_1 = arith.constant 0 : i32
    return %arg0, %c0_i32, %c0_i32_0 : i32, i32, i32
  }
  func.func @transform_1(%arg0: i32) -> (i32, i32) {
    %c0_i32 = arith.constant 0 : i32
    %c0_i32_0 = arith.constant 0 : i32
    %c0_i32_1 = arith.constant 0 : i32
    return %c0_i32, %c0_i32_0 : i32, i32
  }
  func.func @transform_2(%arg0: i32) -> (i32, i32) {
    %c0_i32 = arith.constant 0 : i32
    %c0_i32_0 = arith.constant 0 : i32
    %c0_i32_1 = arith.constant 0 : i32
    return %c0_i32, %c0_i32_0 : i32, i32
  }
  func.func @transform_3(%arg0: i32) -> (i32, i32) {
    %c0_i32 = arith.constant 0 : i32
    %c0_i32_0 = arith.constant 0 : i32
    %c0_i32_1 = arith.constant 0 : i32
    return %c0_i32, %c0_i32_0 : i32, i32
  }
  func.func @transform_4(%arg0: i32) -> (i32, i32) {
    %c0_i32 = arith.constant 0 : i32
    %c0_i32_0 = arith.constant 0 : i32
    %c0_i32_1 = arith.constant 0 : i32
    return %c0_i32, %c0_i32_0 : i32, i32
  }
  func.func @transform_5(%arg0: i32) -> (i32, i32) {
    %c0_i32 = arith.constant 0 : i32
    %c0_i32_0 = arith.constant 0 : i32
    %c0_i32_1 = arith.constant 0 : i32
    return %c0_i32, %c0_i32_0 : i32, i32
  }
  func.func @transform_6(%arg0: i32) -> (i32, i32) {
    %c0_i32 = arith.constant 0 : i32
    %c0_i32_0 = arith.constant 0 : i32
    return %arg0, %c0_i32 : i32, i32
  }
}

module attributes {stable_mosaic.version = 11 : i64} {
  func.func @sift_norm_kernel(%arg0: i32, %arg1: memref<4x128xf32, #tpu.memory_space<vmem>>, %arg2: memref<4x128xf32, #tpu.memory_space<vmem>>) attributes {dimension_semantics = [#tpu.dimension_semantics<parallel>], iteration_bounds = array<i64: 1>, scalar_prefetch = 0 : i64, scratch_operands = 0 : i64, tpu.core_type = #tpu.core_type<tc>, window_params = [{transform_indices = @transform_0, window_bounds = array<i64: 4, 128>}, {transform_indices = @transform_1, window_bounds = array<i64: 4, 128>}]} {
    %c0 = arith.constant 0 : index
    %c0_0 = arith.constant 0 : index
    %0 = vector.load %arg1[%c0, %c0_0] : memref<4x128xf32, #tpu.memory_space<vmem>>, vector<4x128xf32>
    %1 = arith.mulf %0, %0 : vector<4x128xf32>
    %cst = arith.constant dense<0.000000e+00> : vector<4xf32>
    %2 = vector.multi_reduction <add>, %1, %cst [1] : vector<4x128xf32> to vector<4xf32>
    %3 = vector.shape_cast %2 : vector<4xf32> to vector<4x1xf32>
    %cst_1 = arith.constant 1.000000e-24 : f32
    %4 = vector.broadcast %cst_1 : f32 to vector<4x1xf32>
    %5 = arith.maximumf %3, %4 : vector<4x1xf32>
    %6 = math.rsqrt %5 : vector<4x1xf32>
    %7 = vector.broadcast %6 : vector<4x1xf32> to vector<4x128xf32>
    %8 = arith.mulf %0, %7 : vector<4x128xf32>
    %cst_2 = arith.constant 0.000000e+00 : f32
    %cst_3 = arith.constant 2.000000e-01 : f32
    %9 = vector.broadcast %cst_2 : f32 to vector<4x128xf32>
    %10 = arith.maximumf %9, %8 : vector<4x128xf32>
    %11 = vector.broadcast %cst_3 : f32 to vector<4x128xf32>
    %12 = arith.minimumf %11, %10 : vector<4x128xf32>
    %13 = arith.mulf %12, %12 : vector<4x128xf32>
    %cst_4 = arith.constant dense<0.000000e+00> : vector<4xf32>
    %14 = vector.multi_reduction <add>, %13, %cst_4 [1] : vector<4x128xf32> to vector<4xf32>
    %15 = vector.shape_cast %14 : vector<4xf32> to vector<4x1xf32>
    %cst_5 = arith.constant 1.000000e-24 : f32
    %16 = vector.broadcast %cst_5 : f32 to vector<4x1xf32>
    %17 = arith.maximumf %15, %16 : vector<4x1xf32>
    %18 = math.rsqrt %17 : vector<4x1xf32>
    %19 = vector.broadcast %18 : vector<4x1xf32> to vector<4x128xf32>
    %20 = arith.mulf %12, %19 : vector<4x128xf32>
    %21 = math.absf %20 : vector<4x128xf32>
    %cst_6 = arith.constant dense<0.000000e+00> : vector<4xf32>
    %22 = vector.multi_reduction <add>, %21, %cst_6 [1] : vector<4x128xf32> to vector<4xf32>
    %23 = vector.shape_cast %22 : vector<4xf32> to vector<4x1xf32>
    %cst_7 = arith.constant 9.99999996E-13 : f32
    %24 = vector.broadcast %cst_7 : f32 to vector<4x1xf32>
    %25 = arith.maximumf %23, %24 : vector<4x1xf32>
    %cst_8 = arith.constant 1.000000e+00 : f32
    %26 = vector.broadcast %cst_8 : f32 to vector<4x1xf32>
    %27 = arith.divf %26, %25 : vector<4x1xf32>
    %28 = vector.broadcast %27 : vector<4x1xf32> to vector<4x128xf32>
    %29 = arith.mulf %20, %28 : vector<4x128xf32>
    %cst_9 = arith.constant 1.000000e-10 : f32
    %30 = vector.broadcast %cst_9 : f32 to vector<4x128xf32>
    %31 = arith.addf %29, %30 : vector<4x128xf32>
    %32 = math.sqrt %31 : vector<4x128xf32>
    %c0_10 = arith.constant 0 : index
    %c0_11 = arith.constant 0 : index
    %33 = vector.load %arg2[%c0_10, %c0_11] : memref<4x128xf32, #tpu.memory_space<vmem>>, vector<4x128xf32>
    tpu.vector_store %arg2[%c0_10, %c0_11], %32 {strides = array<i32>} : memref<4x128xf32, #tpu.memory_space<vmem>>, vector<4x128xf32>,
    return
  }
  func.func @transform_0(%arg0: i32) -> (i32, i32) {
    %c0_i32 = arith.constant 0 : i32
    %c0_i32_0 = arith.constant 0 : i32
    return %arg0, %c0_i32 : i32, i32
  }
  func.func @transform_1(%arg0: i32) -> (i32, i32) {
    %c0_i32 = arith.constant 0 : i32
    %c0_i32_0 = arith.constant 0 : i32
    return %arg0, %c0_i32 : i32, i32
  }
}

</mosaic_0001>

<llo_original>
// kernel: siftnet_forward.3
$region0: #{siftnet_forward.3}
  #allocation0 [shape = 'u32[]', space=smem, size = 0x4, offset = 0x4, fixed_abs, tag = 'smem constant byte address 0x4 - core index']
  #allocation1 [shape = 'u32[144,128]{1,0:T(1,128)}', space=vmem, size = 0x12000, scoped, tag = 'internal scratch']
  %s0 = inlined_call_operand.vmem [shape: f32[4,128], index: 0, kind: input, shape index: {}]
  %s1 = inlined_call_operand.vmem [shape: f32[4,128], index: 1, kind: output, shape index: {}]
  %s2 = sld [smem:[#allocation0]]
  $region14: #{siftnet_forward.3} parent=0
    _
  %s4 = ssub.s32 1, %s2
  %s5 = scalar_select 0, %s4, %s2
  // Predicated region
  $region2: #{siftnet_forward.3} parent=0 // pred_check
    _
  $region3: #{siftnet_forward.3} parent=0 // pred_check_branch
    %7 = sbr.rel (0) target = $region5
  $region4: #{siftnet_forward.3} parent=0 // pred_region
    _
  $region5: #{siftnet_forward.3} parent=0 // pred_fallthru
    _
  %v8 = vld [vmem:[%s0] sm:$0xf]
  %v9 = vmul.f32 %v8, %v8
  %vm10 = vcmask 1043456
  %v11 = vsel %vm10, %v9, 0.0
  %12 = vadd.xlane.f32.xlu0 %v11
  %v13 = vpop.xlane.xlu0 %12
  %v14 = vmax.f32 %v13, 1e-24
  %v15 = vrsqrt.pop %v14
  %v16 = vmul.f32 %v8, %v15
  %v17 = vmax.f32 %v16, 0.0
  %v18 = vmin.f32 %v17, 0.2
  %v19 = vmul.f32 %v18, %v18
  %v20 = vsel %vm10, %v19, 0.0
  %21 = vadd.xlane.f32.xlu0 %v20
  %v22 = vpop.xlane.xlu0 %21
  %v23 = vmax.f32 %v22, 1e-24
  %v24 = vrsqrt.pop %v23
  %v25 = vmul.f32 %v18, %v24
  %v26 = vand.u32 2147483647, %v25
  %v27 = vsel %vm10, %v26, 0.0
  %28 = vadd.xlane.f32.xlu0 %v27
  %v29 = vpop.xlane.xlu0 %28
  %v30 = vmax.f32 %v29, 1e-12
  %v31 = vrcp.pop %v30
  %v32 = vmul.f32 1.0, %v31
  %v33 = vmul.f32 %v25, %v32
  %v34 = vadd.f32 %v33, 1e-10
  %v35 = vrsqrt.pop %v34
  %v36 = vmul.f32 %v34, %v35
  %vm37 = vcmp.eq.f32.partialorder %v34, inf
  %v38 = vsel %vm37, %v34, %v36
  %vm39 = vcmp.eq.f32.partialorder %v34, 0.0
  %v40 = vand.u32 %v34, 2147483648
  %v41 = vsel %vm39, %v40, %v38
  %42 = vst [vmem:[%s1] sm:$0xf] %v41
  // Predicated region
  $region6: #{siftnet_forward.3} parent=0 // pred_check
    _
  $region7: #{siftnet_forward.3} parent=0 // pred_check_branch
    %44 = sbr.rel (0) target = $region9
  $region8: #{siftnet_forward.3} parent=0 // pred_region
    _
  $region9: #{siftnet_forward.3} parent=0 // pred_fallthru
    _
  // Predicated region
  $region10: #{siftnet_forward.3} parent=0 // pred_check
    _
  $region11: #{siftnet_forward.3} parent=0 // pred_check_branch
    %46 = sbr.rel (0) target = $region13
  $region12: #{siftnet_forward.3} parent=0 // pred_region
    _
  $region13: #{siftnet_forward.3} parent=0 // pred_fallthru
    _

// kernel: siftnet_forward.2
$region0: #{siftnet_forward.2}
  #allocation0 [shape = 'u32[]', space=smem, size = 0x4, offset = 0x4, fixed_abs, tag = 'smem constant byte address 0x4 - core index']
  #allocation1 [shape = 'u32[144,128]{1,0:T(1,128)}', space=vmem, size = 0x12000, scoped, tag = 'internal scratch']
  %s0 = inlined_call_operand.vmem [shape: f32[1,32,128], index: 0, kind: input, shape index: {}]
  %s1 = inlined_call_operand.vmem [shape: f32[32,128], index: 1, kind: input, shape index: {}]
  %s2 = inlined_call_operand.vmem [shape: f32[32,32], index: 2, kind: input, shape index: {}]
  %s3 = inlined_call_operand.vmem [shape: f32[128,128], index: 3, kind: input, shape index: {}]
  %s4 = inlined_call_operand.vmem [shape: f32[128,16], index: 4, kind: input, shape index: {}]
  %s5 = inlined_call_operand.vmem [shape: f32[4,32], index: 5, kind: input, shape index: {}]
  %s6 = inlined_call_operand.vmem [shape: f32[4,128], index: 6, kind: output, shape index: {}]
  %s7 = sld [smem:[#allocation0]]
  $region34: #{siftnet_forward.2} parent=0
    _
  %s9 = ssub.s32 1, %s7
  %s10 = scalar_select 0, %s9, %s7
  // Predicated region
  $region2: #{siftnet_forward.2} parent=0 // pred_check
    _
  $region3: #{siftnet_forward.2} parent=0 // pred_check_branch
    %12 = sbr.rel (0) target = $region5
  $region4: #{siftnet_forward.2} parent=0 // pred_region
    _
  $region5: #{siftnet_forward.2} parent=0 // pred_fallthru
    _
  // Predicated region
  $region6: #{siftnet_forward.2} parent=0 // pred_check
    _
  $region7: #{siftnet_forward.2} parent=0 // pred_check_branch
    %14 = sbr.rel (0) target = $region9
  $region8: #{siftnet_forward.2} parent=0 // pred_region
    _
  $region9: #{siftnet_forward.2} parent=0 // pred_fallthru
    _
  // Predicated region
  $region10: #{siftnet_forward.2} parent=0 // pred_check
    _
  $region11: #{siftnet_forward.2} parent=0 // pred_check_branch
    %16 = sbr.rel (0) target = $region13
  $region12: #{siftnet_forward.2} parent=0 // pred_region
    _
  $region13: #{siftnet_forward.2} parent=0 // pred_fallthru
    _
  // Predicated region
  $region14: #{siftnet_forward.2} parent=0 // pred_check
    _
  $region15: #{siftnet_forward.2} parent=0 // pred_check_branch
    %18 = sbr.rel (0) target = $region17
  $region16: #{siftnet_forward.2} parent=0 // pred_region
    _
  $region17: #{siftnet_forward.2} parent=0 // pred_fallthru
    _
  // Predicated region
  $region18: #{siftnet_forward.2} parent=0 // pred_check
    _
  $region19: #{siftnet_forward.2} parent=0 // pred_check_branch
    %20 = sbr.rel (0) target = $region21
  $region20: #{siftnet_forward.2} parent=0 // pred_region
    _
  $region21: #{siftnet_forward.2} parent=0 // pred_fallthru
    _
  // Predicated region
  $region22: #{siftnet_forward.2} parent=0 // pred_check
    _
  $region23: #{siftnet_forward.2} parent=0 // pred_check_branch
    %22 = sbr.rel (0) target = $region25
  $region24: #{siftnet_forward.2} parent=0 // pred_region
    _
  $region25: #{siftnet_forward.2} parent=0 // pred_fallthru
    _
  %v23 = vld [vmem:[%s0] sm:$0xff]
  %v24 = vld [vmem:[%s0 + $0x8] sm:$0xff]
  %v25 = vld [vmem:[%s0 + $0x10] sm:$0xff]
  %v26 = vld [vmem:[%s0 + $0x18] sm:$0xff]
  %v27 = vld [vmem:[%s3] sm:$0xff]
  %v28 = vld [vmem:[%s3 + $0x8] sm:$0xff]
  %v29 = vld [vmem:[%s3 + $0x10] sm:$0xff]
  %v30 = vld [vmem:[%s3 + $0x18] sm:$0xff]
  %v31 = vld [vmem:[%s3 + $0x20] sm:$0xff]
  %v32 = vld [vmem:[%s3 + $0x28] sm:$0xff]
  %v33 = vld [vmem:[%s3 + $0x30] sm:$0xff]
  %v34 = vld [vmem:[%s3 + $0x38] sm:$0xff]
  %v35 = vld [vmem:[%s3 + $0x40] sm:$0xff]
  %v36 = vld [vmem:[%s3 + $0x48] sm:$0xff]
  %v37 = vld [vmem:[%s3 + $0x50] sm:$0xff]
  %v38 = vld [vmem:[%s3 + $0x58] sm:$0xff]
  %v39 = vld [vmem:[%s3 + $0x60] sm:$0xff]
  %v40 = vld [vmem:[%s3 + $0x68] sm:$0xff]
  %v41 = vld [vmem:[%s3 + $0x70] sm:$0xff]
  %v42 = vld [vmem:[%s3 + $0x78] sm:$0xff]
  %43 = vmatprep.subr.mxu0 0.0
  %44 = vmatpush1.msra.mxu0 %v27
  %45 = vmatprep.subr.mxu0 0.0
  %46 = vmatpush1.msra.mxu0 %v28
  %47 = vmatprep.subr.mxu0 0.0
  %48 = vmatpush1.msra.mxu0 %v29
  %49 = vmatprep.subr.mxu0 0.0
  %50 = vmatpush1.msra.mxu0 %v30
  %51 = vmatprep.subr.mxu0 0.0
  %52 = vmatpush1.msra.mxu0 %v31
  %53 = vmatprep.subr.mxu0 0.0
  %54 = vmatpush1.msra.mxu0 %v32
  %55 = vmatprep.subr.mxu0 0.0
  %56 = vmatpush1.msra.mxu0 %v33
  %57 = vmatprep.subr.mxu0 0.0
  %58 = vmatpush1.msra.mxu0 %v34
  %59 = vmatprep.subr.mxu0 0.0
  %60 = vmatpush1.msra.mxu0 %v35
  %61 = vmatprep.subr.mxu0 0.0
  %62 = vmatpush1.msra.mxu0 %v36
  %63 = vmatprep.subr.mxu0 0.0
  %64 = vmatpush1.msra.mxu0 %v37
  %65 = vmatprep.subr.mxu0 0.0
  %66 = vmatpush1.msra.mxu0 %v38
  %67 = vmatprep.subr.mxu0 0.0
  %68 = vmatpush1.msra.mxu0 %v39
  %69 = vmatprep.subr.mxu0 0.0
  %70 = vmatpush1.msra.mxu0 %v40
  %71 = vmatprep.subr.mxu0 0.0
  %72 = vmatpush1.msra.mxu0 %v41
  %73 = vmatprep.subr.mxu0 0.0
  %74 = vmatpush1.msra.mxu0 %v42
  %75 = vmatprep.subr.mxu0 0.0
  %76 = vmatpush1.msra.mxu0 0.0
  %77 = vmatprep.subr.mxu0 0.0
  %78 = vmatpush1.msra.mxu0 0.0
  %79 = vmatprep.subr.mxu0 0.0
  %80 = vmatpush1.msra.mxu0 0.0
  %81 = vmatprep.subr.mxu0 0.0
  %82 = vmatpush1.msra.mxu0 0.0
  %83 = vmatprep.subr.mxu0 0.0
  %84 = vmatpush1.msra.mxu0 0.0
  %85 = vmatprep.subr.mxu0 0.0
  %86 = vmatpush1.msra.mxu0 0.0
  %87 = vmatprep.subr.mxu0 0.0
  %88 = vmatpush1.msra.mxu0 0.0
  %89 = vmatprep.subr.mxu0 0.0
  %90 = vmatpush1.msra.mxu0 0.0
  %91 = vmatprep.subr.mxu0 0.0
  %92 = vmatpush1.msra.mxu0 0.0
  %93 = vmatprep.subr.mxu0 0.0
  %94 = vmatpush1.msra.mxu0 0.0
  %95 = vmatprep.subr.mxu0 0.0
  %96 = vmatpush1.msra.mxu0 0.0
  %97 = vmatprep.subr.mxu0 0.0
  %98 = vmatpush1.msra.mxu0 0.0
  %99 = vmatprep.subr.mxu0 0.0
  %100 = vmatpush1.msra.mxu0 0.0
  %101 = vmatprep.subr.mxu0 0.0
  %102 = vmatpush1.msra.mxu0 0.0
  %103 = vmatprep.subr.mxu0 0.0
  %104 = vmatpush1.msra.mxu0 0.0
  %105 = vmatprep.subr.mxu0 0.0
  %106 = vmatpush1.msra.mxu0 0.0
  %107 = vmatprep.mubr.f32.mxu0 0.0
  %108 = vmatmul.mubr.f32.gmra.mrb[0].mxu0 %v23
  %v109 = vpop.f32.mrb[0].mxu0
  %v110 = vadd.f32 0.0, %v109
  %v111 = vpop.f32.mrb[0].mxu0
  %112 = vmatprep.mubr.f32.mxu0 0.0
  %113 = vmatmul.mubr.f32.gmra.mrb[0].mxu0 %v24
  %v114 = vpop.f32.mrb[0].mxu0
  %v115 = vadd.f32 0.0, %v114
  %v116 = vpop.f32.mrb[0].mxu0
  %117 = vmatprep.mubr.f32.mxu0 0.0
  %118 = vmatmul.mubr.f32.gmra.mrb[0].mxu0 %v25
  %v119 = vpop.f32.mrb[0].mxu0
  %v120 = vadd.f32 0.0, %v119
  %v121 = vpop.f32.mrb[0].mxu0
  %122 = vmatprep.mubr.f32.mxu0 0.0
  %123 = vmatmul.mubr.f32.gmra.mrb[0].mxu0 %v26
  %v124 = vpop.f32.mrb[0].mxu0
  %v125 = vadd.f32 0.0, %v124
  %v126 = vpop.f32.mrb[0].mxu0
  %127 = vdwg.mxu0
  %v128 = vld [vmem:[%s2] sm:$0xff]
  %v129 = vld [vmem:[%s2 + $0x8] sm:$0xff]
  %v130 = vld [vmem:[%s2 + $0x10] sm:$0xff]
  %v131 = vld [vmem:[%s2 + $0x18] sm:$0xff]
  %vm132 = vcmask 261120
  %v134 = vsel %vm132, %v128, 0
  %v137 = vsel %vm132, %v129, 0
  %v140 = vsel %vm132, %v130, 0
  %v143 = vsel %vm132, %v131, 0
  %145 = vmatprep.subr.mxu0 0.0
  %146 = vmatpush1.msra.mxu0 %v23
  %147 = vmatprep.subr.mxu0 0.0
  %148 = vmatpush1.msra.mxu0 %v24
  %149 = vmatprep.subr.mxu0 0.0
  %150 = vmatpush1.msra.mxu0 %v25
  %151 = vmatprep.subr.mxu0 0.0
  %152 = vmatpush1.msra.mxu0 %v26
  %153 = vmatprep.subr.mxu0 0.0
  %154 = vmatpush1.msra.mxu0 0.0
  %155 = vmatprep.subr.mxu0 0.0
  %156 = vmatpush1.msra.mxu0 0.0
  %157 = vmatprep.subr.mxu0 0.0
  %158 = vmatpush1.msra.mxu0 0.0
  %159 = vmatprep.subr.mxu0 0.0
  %160 = vmatpush1.msra.mxu0 0.0
  %161 = vmatprep.subr.mxu0 0.0
  %162 = vmatpush1.msra.mxu0 0.0
  %163 = vmatprep.subr.mxu0 0.0
  %164 = vmatpush1.msra.mxu0 0.0
  %165 = vmatprep.subr.mxu0 0.0
  %166 = vmatpush1.msra.mxu0 0.0
  %167 = vmatprep.subr.mxu0 0.0
  %168 = vmatpush1.msra.mxu0 0.0
  %169 = vmatprep.subr.mxu0 0.0
  %170 = vmatpush1.msra.mxu0 0.0
  %171 = vmatprep.subr.mxu0 0.0
  %172 = vmatpush1.msra.mxu0 0.0
  %173 = vmatprep.subr.mxu0 0.0
  %174 = vmatpush1.msra.mxu0 0.0
  %175 = vmatprep.subr.mxu0 0.0
  %176 = vmatpush1.msra.mxu0 0.0
  %177 = vmatprep.subr.mxu0 0.0
  %178 = vmatpush1.msra.mxu0 0.0
  %179 = vmatprep.subr.mxu0 0.0
  %180 = vmatpush1.msra.mxu0 0.0
  %181 = vmatprep.subr.mxu0 0.0
  %182 = vmatpush1.msra.mxu0 0.0
  %183 = vmatprep.subr.mxu0 0.0
  %184 = vmatpush1.msra.mxu0 0.0
  %185 = vmatprep.subr.mxu0 0.0
  %186 = vmatpush1.msra.mxu0 0.0
  %187 = vmatprep.subr.mxu0 0.0
  %188 = vmatpush1.msra.mxu0 0.0
  %189 = vmatprep.subr.mxu0 0.0
  %190 = vmatpush1.msra.mxu0 0.0
  %191 = vmatprep.subr.mxu0 0.0
  %192 = vmatpush1.msra.mxu0 0.0
  %193 = vmatprep.subr.mxu0 0.0
  %194 = vmatpush1.msra.mxu0 0.0
  %195 = vmatprep.subr.mxu0 0.0
  %196 = vmatpush1.msra.mxu0 0.0
  %197 = vmatprep.subr.mxu0 0.0
  %198 = vmatpush1.msra.mxu0 0.0
  %199 = vmatprep.subr.mxu0 0.0
  %200 = vmatpush1.msra.mxu0 0.0
  %201 = vmatprep.subr.mxu0 0.0
  %202 = vmatpush1.msra.mxu0 0.0
  %203 = vmatprep.subr.mxu0 0.0
  %204 = vmatpush1.msra.mxu0 0.0
  %205 = vmatprep.subr.mxu0 0.0
  %206 = vmatpush1.msra.mxu0 0.0
  %207 = vmatprep.subr.mxu0 0.0
  %208 = vmatpush1.msra.mxu0 0.0
  %209 = vmatprep.mubr.f32.mxu0 0.0
  %210 = vmatmul.mubr.f32.gmra.mrb[0].mxu0 %v134
  %v211 = vpop.f32.mrb[0].mxu0
  %v212 = vadd.f32 0.0, %v211
  %v213 = vpop.f32.mrb[0].mxu0
  %214 = vmatprep.mubr.f32.mxu0 0.0
  %215 = vmatmul.mubr.f32.gmra.mrb[0].mxu0 %v137
  %v216 = vpop.f32.mrb[0].mxu0
  %v217 = vadd.f32 0.0, %v216
  %v218 = vpop.f32.mrb[0].mxu0
  %219 = vmatprep.mubr.f32.mxu0 0.0
  %220 = vmatmul.mubr.f32.gmra.mrb[0].mxu0 %v140
  %v221 = vpop.f32.mrb[0].mxu0
  %v222 = vadd.f32 0.0, %v221
  %v223 = vpop.f32.mrb[0].mxu0
  %224 = vmatprep.mubr.f32.mxu0 0.0
  %225 = vmatmul.mubr.f32.gmra.mrb[0].mxu0 %v143
  %v226 = vpop.f32.mrb[0].mxu0
  %v227 = vadd.f32 0.0, %v226
  %v228 = vpop.f32.mrb[0].mxu0
  %229 = vdwg.mxu0
  %v230 = vmul.f32 %v110, %v110
  %v231 = vmul.f32 %v115, %v115
  %v232 = vmul.f32 %v120, %v120
  %v233 = vmul.f32 %v125, %v125
  %v234 = vmul.f32 %v212, %v212
  %v235 = vmul.f32 %v217, %v217
  %v236 = vmul.f32 %v222, %v222
  %v237 = vmul.f32 %v227, %v227
  %v238 = vadd.f32 %v230, %v234
  %v239 = vadd.f32 %v231, %v235
  %v240 = vadd.f32 %v232, %v236
  %v241 = vadd.f32 %v233, %v237
  %v242 = vadd.f32 %v238, 1e-10
  %v243 = vadd.f32 %v239, 1e-10
  %v244 = vadd.f32 %v240, 1e-10
  %v245 = vadd.f32 %v241, 1e-10
  %v246 = vrsqrt.pop %v242
  %v247 = vmul.f32 %v242, %v246
  %vm248 = vcmp.eq.f32.partialorder %v242, inf
  %v249 = vsel %vm248, %v242, %v247
  %vm250 = vcmp.eq.f32.partialorder %v242, 0.0
  %v251 = vand.u32 %v242, 2147483648
  %v252 = vsel %vm250, %v251, %v249
  %v253 = vrsqrt.pop %v243
  %v254 = vmul.f32 %v243, %v253
  %vm255 = vcmp.eq.f32.partialorder %v243, inf
  %v256 = vsel %vm255, %v243, %v254
  %vm257 = vcmp.eq.f32.partialorder %v243, 0.0
  %v258 = vand.u32 %v243, 2147483648
  %v259 = vsel %vm257, %v258, %v256
  %v260 = vrsqrt.pop %v244
  %v261 = vmul.f32 %v244, %v260
  %vm262 = vcmp.eq.f32.partialorder %v244, inf
  %v263 = vsel %vm262, %v244, %v261
  %vm264 = vcmp.eq.f32.partialorder %v244, 0.0
  %v265 = vand.u32 %v244, 2147483648
  %v266 = vsel %vm264, %v265, %v263
  %v267 = vrsqrt.pop %v245
  %v268 = vmul.f32 %v245, %v267
  %vm269 = vcmp.eq.f32.partialorder %v245, inf
  %v270 = vsel %vm269, %v245, %v268
  %vm271 = vcmp.eq.f32.partialorder %v245, 0.0
  %v272 = vand.u32 %v245, 2147483648
  %v273 = vsel %vm271, %v272, %v270
  %v274 = vld [vmem:[%s1] sm:$0xff]
  %v275 = vld [vmem:[%s1 + $0x8] sm:$0xff]
  %v276 = vld [vmem:[%s1 + $0x10] sm:$0xff]
  %v277 = vld [vmem:[%s1 + $0x18] sm:$0xff]
  %v278 = vmul.f32 %v252, %v274
  %v279 = vmul.f32 %v259, %v275
  %v280 = vmul.f32 %v266, %v276
  %v281 = vmul.f32 %v273, %v277
  %v282 = vadd.f32 %v110, 1e-10
  %v283 = vadd.f32 %v115, 1e-10
  %v284 = vadd.f32 %v120, 1e-10
  %v285 = vadd.f32 %v125, 1e-10
  %v286 = vand.u32 2147483647, %v282
  %v287 = vand.u32 2147483647, %v283
  %v288 = vand.u32 2147483647, %v284
  %v289 = vand.u32 2147483647, %v285
  %v290 = vand.u32 2147483647, %v212
  %v291 = vand.u32 2147483647, %v217
  %v292 = vand.u32 2147483647, %v222
  %v293 = vand.u32 2147483647, %v227
  %v294 = vmax.f32 %v286, %v290
  %v295 = vmax.f32 %v287, %v291
  %v296 = vmax.f32 %v288, %v292
  %v297 = vmax.f32 %v289, %v293
  %v298 = vmin.f32 %v286, %v290
  %v299 = vmin.f32 %v287, %v291
  %v300 = vmin.f32 %v288, %v292
  %v301 = vmin.f32 %v289, %v293
  %vm302 = vcmp.gt.f32.partialorder %v294, 0.0
  %vm303 = vcmp.gt.f32.partialorder %v295, 0.0
  %vm304 = vcmp.gt.f32.partialorder %v296, 0.0
  %vm305 = vcmp.gt.f32.partialorder %v297, 0.0
  %v306 = vmax.f32 %v294, 1e-30
  %v307 = vmax.f32 %v295, 1e-30
  %v308 = vmax.f32 %v296, 1e-30
  %v309 = vmax.f32 %v297, 1e-30
  %v310 = vrcp.pop %v306
  %v311 = vmul.f32 %v298, %v310
  %v312 = vrcp.pop %v307
  %v313 = vmul.f32 %v299, %v312
  %v314 = vrcp.pop %v308
  %v315 = vmul.f32 %v300, %v314
  %v316 = vrcp.pop %v309
  %v317 = vmul.f32 %v301, %v316
  %v318 = vsel %vm302, %v311, 0.0
  %v319 = vsel %vm303, %v313, 0.0
  %v320 = vsel %vm304, %v315, 0.0
  %v321 = vsel %vm305, %v317, 0.0
  %vm322 = vcmp.le.f32.partialorder %v318, 0.19891237
  %vm323 = vcmp.le.f32.partialorder %v319, 0.19891237
  %vm324 = vcmp.le.f32.partialorder %v320, 0.19891237
  %vm325 = vcmp.le.f32.partialorder %v321, 0.19891237
  %vm326 = vcmp.le.f32.partialorder %v318, 0.6681786
  %vm327 = vcmp.le.f32.partialorder %v319, 0.6681786
  %vm328 = vcmp.le.f32.partialorder %v320, 0.6681786
  %vm329 = vcmp.le.f32.partialorder %v321, 0.6681786
  %v330 = vsel %vm326, 0.41421357, 1.0
  %v331 = vsel %vm327, 0.41421357, 1.0
  %v332 = vsel %vm328, 0.41421357, 1.0
  %v333 = vsel %vm329, 0.41421357, 1.0
  %v334 = vsel %vm322, 0.0, %v330
  %v335 = vsel %vm323, 0.0, %v331
  %v336 = vsel %vm324, 0.0, %v332
  %v337 = vsel %vm325, 0.0, %v333
  %v338 = vsel %vm326, 0.3926991, 0.7853982
  %v339 = vsel %vm327, 0.3926991, 0.7853982
  %v340 = vsel %vm328, 0.3926991, 0.7853982
  %v341 = vsel %vm329, 0.3926991, 0.7853982
  %v342 = vsel %vm322, 0.0, %v338
  %v343 = vsel %vm323, 0.0, %v339
  %v344 = vsel %vm324, 0.0, %v340
  %v345 = vsel %vm325, 0.0, %v341
  %v346 = vsub.f32 %v318, %v334
  %v347 = vsub.f32 %v319, %v335
  %v348 = vsub.f32 %v320, %v336
  %v349 = vsub.f32 %v321, %v337
  %v350 = vmul.f32 %v318, %v334
  %v351 = vmul.f32 %v319, %v335
  %v352 = vmul.f32 %v320, %v336
  %v353 = vmul.f32 %v321, %v337
  %v354 = vadd.f32 %v350, 1.0
  %v355 = vadd.f32 %v351, 1.0
  %v356 = vadd.f32 %v352, 1.0
  %v357 = vadd.f32 %v353, 1.0
  %v358 = vrcp.pop %v354
  %v359 = vmul.f32 %v346, %v358
  %v360 = vrcp.pop %v355
  %v361 = vmul.f32 %v347, %v360
  %v362 = vrcp.pop %v356
  %v363 = vmul.f32 %v348, %v362
  %v364 = vrcp.pop %v357
  %v365 = vmul.f32 %v349, %v364
  %v366 = vmul.f32 %v359, %v359
  %v367 = vmul.f32 %v361, %v361
  %v368 = vmul.f32 %v363, %v363
  %v369 = vmul.f32 %v365, %v365
  %v370 = vmul.f32 %v366, 0.11111111
  %v371 = vmul.f32 %v367, 0.11111111
  %v372 = vmul.f32 %v368, 0.11111111
  %v373 = vmul.f32 %v369, 0.11111111
  %v374 = vadd.f32 %v370, -0.14285715
  %v375 = vadd.f32 %v371, -0.14285715
  %v376 = vadd.f32 %v372, -0.14285715
  %v377 = vadd.f32 %v373, -0.14285715
  %v378 = vmul.f32 %v366, %v374
  %v379 = vmul.f32 %v367, %v375
  %v380 = vmul.f32 %v368, %v376
  %v381 = vmul.f32 %v369, %v377
  %v382 = vadd.f32 %v378, 0.2
  %v383 = vadd.f32 %v379, 0.2
  %v384 = vadd.f32 %v380, 0.2
  %v385 = vadd.f32 %v381, 0.2
  %v386 = vmul.f32 %v366, %v382
  %v387 = vmul.f32 %v367, %v383
  %v388 = vmul.f32 %v368, %v384
  %v389 = vmul.f32 %v369, %v385
  %v390 = vadd.f32 %v386, -0.33333334
  %v391 = vadd.f32 %v387, -0.33333334
  %v392 = vadd.f32 %v388, -0.33333334
  %v393 = vadd.f32 %v389, -0.33333334
  %v394 = vmul.f32 %v366, %v390
  %v395 = vmul.f32 %v367, %v391
  %v396 = vmul.f32 %v368, %v392
  %v397 = vmul.f32 %v369, %v393
  %v398 = vadd.f32 %v394, 1.0
  %v399 = vadd.f32 %v395, 1.0
  %v400 = vadd.f32 %v396, 1.0
  %v401 = vadd.f32 %v397, 1.0
  %v402 = vmul.f32 %v359, %v398
  %v403 = vmul.f32 %v361, %v399
  %v404 = vmul.f32 %v363, %v400
  %v405 = vmul.f32 %v365, %v401
  %v406 = vadd.f32 %v342, %v402
  %v407 = vadd.f32 %v343, %v403
  %v408 = vadd.f32 %v344, %v404
  %v409 = vadd.f32 %v345, %v405
  %vm410 = vcmp.gt.f32.partialorder %v290, %v286
  %vm411 = vcmp.gt.f32.partialorder %v291, %v287
  %vm412 = vcmp.gt.f32.partialorder %v292, %v288
  %vm413 = vcmp.gt.f32.partialorder %v293, %v289
  %v414 = vsub.f32 1.5707964, %v406
  %v415 = vsub.f32 1.5707964, %v407
  %v416 = vsub.f32 1.5707964, %v408
  %v417 = vsub.f32 1.5707964, %v409
  %v418 = vsel %vm410, %v414, %v406
  %v419 = vsel %vm411, %v415, %v407
  %v420 = vsel %vm412, %v416, %v408
  %v421 = vsel %vm413, %v417, %v409
  %vm422 = vcmp.lt.f32.partialorder %v282, 0.0
  %vm423 = vcmp.lt.f32.partialorder %v283, 0.0
  %vm424 = vcmp.lt.f32.partialorder %v284, 0.0
  %vm425 = vcmp.lt.f32.partialorder %v285, 0.0
  %v426 = vsub.f32 3.1415927, %v418
  %v427 = vsub.f32 3.1415927, %v419
  %v428 = vsub.f32 3.1415927, %v420
  %v429 = vsub.f32 3.1415927, %v421
  %v430 = vsel %vm422, %v426, %v418
  %v431 = vsel %vm423, %v427, %v419
  %v432 = vsel %vm424, %v428, %v420
  %v433 = vsel %vm425, %v429, %v421
  %vm434 = vcmp.lt.f32.partialorder %v212, 0.0
  %vm435 = vcmp.lt.f32.partialorder %v217, 0.0
  %vm436 = vcmp.lt.f32.partialorder %v222, 0.0
  %vm437 = vcmp.lt.f32.partialorder %v227, 0.0
  %v438 = vsub.f32 0.0, %v430
  %v439 = vsub.f32 0.0, %v431
  %v440 = vsub.f32 0.0, %v432
  %v441 = vsub.f32 0.0, %v433
  %v442 = vsel %vm434, %v438, %v430
  %v443 = vsel %vm435, %v439, %v431
  %v444 = vsel %vm436, %v440, %v432
  %v445 = vsel %vm437, %v441, %v433
  %v446 = vadd.f32 %v442, 6.2831855
  %v447 = vadd.f32 %v443, 6.2831855
  %v448 = vadd.f32 %v444, 6.2831855
  %v449 = vadd.f32 %v445, 6.2831855
  %v450 = vmul.f32 %v446, 1.2732395
  %v451 = vmul.f32 %v447, 1.2732395
  %v452 = vmul.f32 %v448, 1.2732395
  %v453 = vmul.f32 %v449, 1.2732395
  %v454 = vcvt.f32.s32.to.zero.pseudo %v450
  %v455 = vcvt.f32.s32.to.zero.pseudo %v451
  %v456 = vcvt.f32.s32.to.zero.pseudo %v452
  %v457 = vcvt.f32.s32.to.zero.pseudo %v453
  %v458 = vcvt.s32.f32 %v454
  %v459 = vcvt.s32.f32 %v455
  %v460 = vcvt.s32.f32 %v456
  %v461 = vcvt.s32.f32 %v457
  %v462 = vsub.f32 %v450, %v458
  %v463 = vsub.f32 %v451, %v459
  %v464 = vsub.f32 %v452, %v460
  %v465 = vsub.f32 %v453, %v461
  %v466 = vcvt.f32.s32.to.zero.pseudo %v458
  %v467 = vcvt.f32.s32.to.zero.pseudo %v459
  %v468 = vcvt.f32.s32.to.zero.pseudo %v460
  %v469 = vcvt.f32.s32.to.zero.pseudo %v461
  %vm470 = vcmp.ge.s32.totalorder %v466, 8
  %vm471 = vcmp.ge.s32.totalorder %v467, 8
  %vm472 = vcmp.ge.s32.totalorder %v468, 8
  %vm473 = vcmp.ge.s32.totalorder %v469, 8
  %v474 = vsub.s32 %v466, 8
  %v475 = vsub.s32 %v467, 8
  %v476 = vsub.s32 %v468, 8
  %v477 = vsub.s32 %v469, 8
  %v478 = vsel %vm470, %v474, %v466
  %v479 = vsel %vm471, %v475, %v467
  %v480 = vsel %vm472, %v476, %v468
  %v481 = vsel %vm473, %v477, %v469
  %v482 = vsub.f32 1.0, %v462
  %v483 = vsub.f32 1.0, %v463
  %v484 = vsub.f32 1.0, %v464
  %v485 = vsub.f32 1.0, %v465
  %v486 = vmul.f32 %v482, %v278
  %v487 = vmul.f32 %v483, %v279
  %v488 = vmul.f32 %v484, %v280
  %v489 = vmul.f32 %v485, %v281
  %v490 = vmul.f32 %v462, %v278
  %v491 = vmul.f32 %v463, %v279
  %v492 = vmul.f32 %v464, %v280
  %v493 = vmul.f32 %v465, %v281
  %v494 = vld [vmem:[%s4] sm:$0xff]
  %v495 = vld [vmem:[%s4 + $0x8] sm:$0xff]
  %v496 = vld [vmem:[%s4 + $0x10] sm:$0xff]
  %v497 = vld [vmem:[%s4 + $0x18] sm:$0xff]
  %v498 = vld [vmem:[%s4 + $0x20] sm:$0xff]
  %v499 = vld [vmem:[%s4 + $0x28] sm:$0xff]
  %v500 = vld [vmem:[%s4 + $0x30] sm:$0xff]
  %v501 = vld [vmem:[%s4 + $0x38] sm:$0xff]
  %v502 = vld [vmem:[%s4 + $0x40] sm:$0xff]
  %v503 = vld [vmem:[%s4 + $0x48] sm:$0xff]
  %v504 = vld [vmem:[%s4 + $0x50] sm:$0xff]
  %v505 = vld [vmem:[%s4 + $0x58] sm:$0xff]
  %v506 = vld [vmem:[%s4 + $0x60] sm:$0xff]
  %v507 = vld [vmem:[%s4 + $0x68] sm:$0xff]
  %v508 = vld [vmem:[%s4 + $0x70] sm:$0xff]
  %v509 = vld [vmem:[%s4 + $0x78] sm:$0xff]
  %v510 = vld [vmem:[%s5] sm:$0xf]
  %vm511 = vcmp.eq.s32.totalorder %v478, 7
  %vm512 = vcmp.eq.s32.totalorder %v479, 7
  %vm513 = vcmp.eq.s32.totalorder %v480, 7
  %vm514 = vcmp.eq.s32.totalorder %v481, 7
  %vm515 = vcmp.eq.s32.totalorder %v478, 0
  %vm516 = vcmp.eq.s32.totalorder %v479, 0
  %vm517 = vcmp.eq.s32.totalorder %v480, 0
  %vm518 = vcmp.eq.s32.totalorder %v481, 0
  %v519 = vsel %vm515, %v486, 0.0
  %v520 = vsel %vm516, %v487, 0.0
  %v521 = vsel %vm517, %v488, 0.0
  %v522 = vsel %vm518, %v489, 0.0
  %v523 = vsel %vm511, %v490, 0.0
  %v524 = vsel %vm512, %v491, 0.0
  %v525 = vsel %vm513, %v492, 0.0
  %v526 = vsel %vm514, %v493, 0.0
  %v527 = vadd.f32 %v519, %v523
  %v528 = vadd.f32 %v520, %v524
  %v529 = vadd.f32 %v521, %v525
  %v530 = vadd.f32 %v522, %v526
  %531 = vmatprep.subr.mxu0 0.0
  %532 = vmatpush1.msra.mxu0 %v494
  %533 = vmatprep.subr.mxu0 0.0
  %534 = vmatpush1.msra.mxu0 %v495
  %535 = vmatprep.subr.mxu0 0.0
  %536 = vmatpush1.msra.mxu0 %v496
  %537 = vmatprep.subr.mxu0 0.0
  %538 = vmatpush1.msra.mxu0 %v497
  %539 = vmatprep.subr.mxu0 0.0
  %540 = vmatpush1.msra.mxu0 %v498
  %541 = vmatprep.subr.mxu0 0.0
  %542 = vmatpush1.msra.mxu0 %v499
  %543 = vmatprep.subr.mxu0 0.0
  %544 = vmatpush1.msra.mxu0 %v500
  %545 = vmatprep.subr.mxu0 0.0
  %546 = vmatpush1.msra.mxu0 %v501
  %547 = vmatprep.subr.mxu0 0.0
  %548 = vmatpush1.msra.mxu0 %v502
  %549 = vmatprep.subr.mxu0 0.0
  %550 = vmatpush1.msra.mxu0 %v503
  %551 = vmatprep.subr.mxu0 0.0
  %552 = vmatpush1.msra.mxu0 %v504
  %553 = vmatprep.subr.mxu0 0.0
  %554 = vmatpush1.msra.mxu0 %v505
  %555 = vmatprep.subr.mxu0 0.0
  %556 = vmatpush1.msra.mxu0 %v506
  %557 = vmatprep.subr.mxu0 0.0
  %558 = vmatpush1.msra.mxu0 %v507
  %559 = vmatprep.subr.mxu0 0.0
  %560 = vmatpush1.msra.mxu0 %v508
  %561 = vmatprep.subr.mxu0 0.0
  %562 = vmatpush1.msra.mxu0 %v509
  %563 = vmatprep.subr.mxu0 0.0
  %564 = vmatpush1.msra.mxu0 0.0
  %565 = vmatprep.subr.mxu0 0.0
  %566 = vmatpush1.msra.mxu0 0.0
  %567 = vmatprep.subr.mxu0 0.0
  %568 = vmatpush1.msra.mxu0 0.0
  %569 = vmatprep.subr.mxu0 0.0
  %570 = vmatpush1.msra.mxu0 0.0
  %571 = vmatprep.subr.mxu0 0.0
  %572 = vmatpush1.msra.mxu0 0.0
  %573 = vmatprep.subr.mxu0 0.0
  %574 = vmatpush1.msra.mxu0 0.0
  %575 = vmatprep.subr.mxu0 0.0
  %576 = vmatpush1.msra.mxu0 0.0
  %577 = vmatprep.subr.mxu0 0.0
  %578 = vmatpush1.msra.mxu0 0.0
  %579 = vmatprep.subr.mxu0 0.0
  %580 = vmatpush1.msra.mxu0 0.0
  %581 = vmatprep.subr.mxu0 0.0
  %582 = vmatpush1.msra.mxu0 0.0
  %583 = vmatprep.subr.mxu0 0.0
  %584 = vmatpush1.msra.mxu0 0.0
  %585 = vmatprep.subr.mxu0 0.0
  %586 = vmatpush1.msra.mxu0 0.0
  %587 = vmatprep.subr.mxu0 0.0
  %588 = vmatpush1.msra.mxu0 0.0
  %589 = vmatprep.subr.mxu0 0.0
  %590 = vmatpush1.msra.mxu0 0.0
  %591 = vmatprep.subr.mxu0 0.0
  %592 = vmatpush1.msra.mxu0 0.0
  %593 = vmatprep.subr.mxu0 0.0
  %594 = vmatpush1.msra.mxu0 0.0
  %595 = vmatprep.mubr.f32.mxu0 0.0
  %596 = vmatmul.mubr.f32.gmra.mrb[0].mxu0 %v527
  %v597 = vpop.f32.mrb[0].mxu0
  %v598 = vadd.f32 0.0, %v597
  %v599 = vpop.f32.mrb[0].mxu0
  %600 = vmatprep.mubr.f32.mxu0 0.0
  %601 = vmatmul.mubr.f32.gmra.mrb[0].mxu0 %v528
  %v602 = vpop.f32.mrb[0].mxu0
  %v603 = vadd.f32 0.0, %v602
  %v604 = vpop.f32.mrb[0].mxu0
  %605 = vmatprep.mubr.f32.mxu0 0.0
  %606 = vmatmul.mubr.f32.gmra.mrb[0].mxu0 %v529
  %v607 = vpop.f32.mrb[0].mxu0
  %v608 = vadd.f32 0.0, %v607
  %v609 = vpop.f32.mrb[0].mxu0
  %610 = vmatprep.mubr.f32.mxu0 0.0
  %611 = vmatmul.mubr.f32.gmra.mrb[0].mxu0 %v530
  %v612 = vpop.f32.mrb[0].mxu0
  %v613 = vadd.f32 0.0, %v612
  %v614 = vpop.f32.mrb[0].mxu0
  %615 = vdwg.mxu0
  %v617 = vsel %vm132, %v510, 0
  %619 = vmatprep.subr.mxu0 0.0
  %620 = vmatpush1.msra.mxu0 %v598
  %621 = vmatprep.subr.mxu0 0.0
  %622 = vmatpush1.msra.mxu0 %v603
  %623 = vmatprep.subr.mxu0 0.0
  %624 = vmatpush1.msra.mxu0 %v608
  %625 = vmatprep.subr.mxu0 0.0
  %626 = vmatpush1.msra.mxu0 %v613
  %627 = vmatprep.subr.mxu0 0.0
  %628 = vmatpush1.msra.mxu0 0.0
  %629 = vmatprep.subr.mxu0 0.0
  %630 = vmatpush1.msra.mxu0 0.0
  %631 = vmatprep.subr.mxu0 0.0
  %632 = vmatpush1.msra.mxu0 0.0
  %633 = vmatprep.subr.mxu0 0.0
  %634 = vmatpush1.msra.mxu0 0.0
  %635 = vmatprep.subr.mxu0 0.0
  %636 = vmatpush1.msra.mxu0 0.0
  %637 = vmatprep.subr.mxu0 0.0
  %638 = vmatpush1.msra.mxu0 0.0
  %639 = vmatprep.subr.mxu0 0.0
  %640 = vmatpush1.msra.mxu0 0.0
  %641 = vmatprep.subr.mxu0 0.0
  %642 = vmatpush1.msra.mxu0 0.0
  %643 = vmatprep.subr.mxu0 0.0
  %644 = vmatpush1.msra.mxu0 0.0
  %645 = vmatprep.subr.mxu0 0.0
  %646 = vmatpush1.msra.mxu0 0.0
  %647 = vmatprep.subr.mxu0 0.0
  %648 = vmatpush1.msra.mxu0 0.0
  %649 = vmatprep.subr.mxu0 0.0
  %650 = vmatpush1.msra.mxu0 0.0
  %651 = vmatprep.subr.mxu0 0.0
  %652 = vmatpush1.msra.mxu0 0.0
  %653 = vmatprep.subr.mxu0 0.0
  %654 = vmatpush1.msra.mxu0 0.0
  %655 = vmatprep.subr.mxu0 0.0
  %656 = vmatpush1.msra.mxu0 0.0
  %657 = vmatprep.subr.mxu0 0.0
  %658 = vmatpush1.msra.mxu0 0.0
  %659 = vmatprep.subr.mxu0 0.0
  %660 = vmatpush1.msra.mxu0 0.0
  %661 = vmatprep.subr.mxu0 0.0
  %662 = vmatpush1.msra.mxu0 0.0
  %663 = vmatprep.subr.mxu0 0.0
  %664 = vmatpush1.msra.mxu0 0.0
  %665 = vmatprep.subr.mxu0 0.0
  %666 = vmatpush1.msra.mxu0 0.0
  %667 = vmatprep.subr.mxu0 0.0
  %668 = vmatpush1.msra.mxu0 0.0
  %669 = vmatprep.subr.mxu0 0.0
  %670 = vmatpush1.msra.mxu0 0.0
  %671 = vmatprep.subr.mxu0 0.0
  %672 = vmatpush1.msra.mxu0 0.0
  %673 = vmatprep.subr.mxu0 0.0
  %674 = vmatpush1.msra.mxu0 0.0
  %675 = vmatprep.subr.mxu0 0.0
  %676 = vmatpush1.msra.mxu0 0.0
  %677 = vmatprep.subr.mxu0 0.0
  %678 = vmatpush1.msra.mxu0 0.0
  %679 = vmatprep.subr.mxu0 0.0
  %680 = vmatpush1.msra.mxu0 0.0
  %681 = vmatprep.subr.mxu0 0.0
  %682 = vmatpush1.msra.mxu0 0.0
  %683 = vmatprep.mubr.f32.mxu0 0.0
  %684 = vmatmul.mubr.f32.gmra.mrb[0].mxu0 %v617
  %v685 = vpop.f32.mrb[0].mxu0
  %v686 = vadd.f32 0.0, %v685
  %v687 = vpop.f32.mrb[0].mxu0
  %688 = vdwg.mxu0
  %vm689 = vcmask 125952
  %690 = vst.msk [vmem:[%s6] sm:$0xf] %vm689, %v686
  %vm691 = vcmp.eq.s32.totalorder %v478, 1
  %vm692 = vcmp.eq.s32.totalorder %v479, 1
  %vm693 = vcmp.eq.s32.totalorder %v480, 1
  %vm694 = vcmp.eq.s32.totalorder %v481, 1
  %v695 = vsel %vm691, %v486, 0.0
  %v696 = vsel %vm692, %v487, 0.0
  %v697 = vsel %vm693, %v488, 0.0
  %v698 = vsel %vm694, %v489, 0.0
  %v699 = vsel %vm515, %v490, 0.0
  %v700 = vsel %vm516, %v491, 0.0
  %v701 = vsel %vm517, %v492, 0.0
  %v702 = vsel %vm518, %v493, 0.0
  %v703 = vadd.f32 %v695, %v699
  %v704 = vadd.f32 %v696, %v700
  %v705 = vadd.f32 %v697, %v701
  %v706 = vadd.f32 %v698, %v702
  %707 = vmatprep.subr.mxu0 0.0
  %708 = vmatpush1.msra.mxu0 %v494
  %709 = vmatprep.subr.mxu0 0.0
  %710 = vmatpush1.msra.mxu0 %v495
  %711 = vmatprep.subr.mxu0 0.0
  %712 = vmatpush1.msra.mxu0 %v496
  %713 = vmatprep.subr.mxu0 0.0
  %714 = vmatpush1.msra.mxu0 %v497
  %715 = vmatprep.subr.mxu0 0.0
  %716 = vmatpush1.msra.mxu0 %v498
  %717 = vmatprep.subr.mxu0 0.0
  %718 = vmatpush1.msra.mxu0 %v499
  %719 = vmatprep.subr.mxu0 0.0
  %720 = vmatpush1.msra.mxu0 %v500
  %721 = vmatprep.subr.mxu0 0.0
  %722 = vmatpush1.msra.mxu0 %v501
  %723 = vmatprep.subr.mxu0 0.0
  %724 = vmatpush1.msra.mxu0 %v502
  %725 = vmatprep.subr.mxu0 0.0
  %726 = vmatpush1.msra.mxu0 %v503
  %727 = vmatprep.subr.mxu0 0.0
  %728 = vmatpush1.msra.mxu0 %v504
  %729 = vmatprep.subr.mxu0 0.0
  %730 = vmatpush1.msra.mxu0 %v505
  %731 = vmatprep.subr.mxu0 0.0
  %732 = vmatpush1.msra.mxu0 %v506
  %733 = vmatprep.subr.mxu0 0.0
  %734 = vmatpush1.msra.mxu0 %v507
  %735 = vmatprep.subr.mxu0 0.0
  %736 = vmatpush1.msra.mxu0 %v508
  %737 = vmatprep.subr.mxu0 0.0
  %738 = vmatpush1.msra.mxu0 %v509
  %739 = vmatprep.subr.mxu0 0.0
  %740 = vmatpush1.msra.mxu0 0.0
  %741 = vmatprep.subr.mxu0 0.0
  %742 = vmatpush1.msra.mxu0 0.0
  %743 = vmatprep.subr.mxu0 0.0
  %744 = vmatpush1.msra.mxu0 0.0
  %745 = vmatprep.subr.mxu0 0.0
  %746 = vmatpush1.msra.mxu0 0.0
  %747 = vmatprep.subr.mxu0 0.0
  %748 = vmatpush1.msra.mxu0 0.0
  %749 = vmatprep.subr.mxu0 0.0
  %750 = vmatpush1.msra.mxu0 0.0
  %751 = vmatprep.subr.mxu0 0.0
  %752 = vmatpush1.msra.mxu0 0.0
  %753 = vmatprep.subr.mxu0 0.0
  %754 = vmatpush1.msra.mxu0 0.0
  %755 = vmatprep.subr.mxu0 0.0
  %756 = vmatpush1.msra.mxu0 0.0
  %757 = vmatprep.subr.mxu0 0.0
  %758 = vmatpush1.msra.mxu0 0.0
  %759 = vmatprep.subr.mxu0 0.0
  %760 = vmatpush1.msra.mxu0 0.0
  %761 = vmatprep.subr.mxu0 0.0
  %762 = vmatpush1.msra.mxu0 0.0
  %763 = vmatprep.subr.mxu0 0.0
  %764 = vmatpush1.msra.mxu0 0.0
  %765 = vmatprep.subr.mxu0 0.0
  %766 = vmatpush1.msra.mxu0 0.0
  %767 = vmatprep.subr.mxu0 0.0
  %768 = vmatpush1.msra.mxu0 0.0
  %769 = vmatprep.subr.mxu0 0.0
  %770 = vmatpush1.msra.mxu0 0.0
  %771 = vmatprep.mubr.f32.mxu0 0.0
  %772 = vmatmul.mubr.f32.gmra.mrb[0].mxu0 %v703
  %v773 = vpop.f32.mrb[0].mxu0
  %v774 = vadd.f32 0.0, %v773
  %v775 = vpop.f32.mrb[0].mxu0
  %776 = vmatprep.mubr.f32.mxu0 0.0
  %777 = vmatmul.mubr.f32.gmra.mrb[0].mxu0 %v704
  %v778 = vpop.f32.mrb[0].mxu0
  %v779 = vadd.f32 0.0, %v778
  %v780 = vpop.f32.mrb[0].mxu0
  %781 = vmatprep.mubr.f32.mxu0 0.0
  %782 = vmatmul.mubr.f32.gmra.mrb[0].mxu0 %v705
  %v783 = vpop.f32.mrb[0].mxu0
  %v784 = vadd.f32 0.0, %v783
  %v785 = vpop.f32.mrb[0].mxu0
  %786 = vmatprep.mubr.f32.mxu0 0.0
  %787 = vmatmul.mubr.f32.gmra.mrb[0].mxu0 %v706
  %v788 = vpop.f32.mrb[0].mxu0
  %v789 = vadd.f32 0.0, %v788
  %v790 = vpop.f32.mrb[0].mxu0
  %791 = vdwg.mxu0
  %792 = vmatprep.subr.mxu0 0.0
  %793 = vmatpush1.msra.mxu0 %v774
  %794 = vmatprep.subr.mxu0 0.0
  %795 = vmatpush1.msra.mxu0 %v779
  %796 = vmatprep.subr.mxu0 0.0
  %797 = vmatpush1.msra.mxu0 %v784
  %798 = vmatprep.subr.mxu0 0.0
  %799 = vmatpush1.msra.mxu0 %v789
  %800 = vmatprep.subr.mxu0 0.0
  %801 = vmatpush1.msra.mxu0 0.0
  %802 = vmatprep.subr.mxu0 0.0
  %803 = vmatpush1.msra.mxu0 0.0
  %804 = vmatprep.subr.mxu0 0.0
  %805 = vmatpush1.msra.mxu0 0.0
  %806 = vmatprep.subr.mxu0 0.0
  %807 = vmatpush1.msra.mxu0 0.0
  %808 = vmatprep.subr.mxu0 0.0
  %809 = vmatpush1.msra.mxu0 0.0
  %810 = vmatprep.subr.mxu0 0.0
  %811 = vmatpush1.msra.mxu0 0.0
  %812 = vmatprep.subr.mxu0 0.0
  %813 = vmatpush1.msra.mxu0 0.0
  %814 = vmatprep.subr.mxu0 0.0
  %815 = vmatpush1.msra.mxu0 0.0
  %816 = vmatprep.subr.mxu0 0.0
  %817 = vmatpush1.msra.mxu0 0.0
  %818 = vmatprep.subr.mxu0 0.0
  %819 = vmatpush1.msra.mxu0 0.0
  %820 = vmatprep.subr.mxu0 0.0
  %821 = vmatpush1.msra.mxu0 0.0
  %822 = vmatprep.subr.mxu0 0.0
  %823 = vmatpush1.msra.mxu0 0.0
  %824 = vmatprep.subr.mxu0 0.0
  %825 = vmatpush1.msra.mxu0 0.0
  %826 = vmatprep.subr.mxu0 0.0
  %827 = vmatpush1.msra.mxu0 0.0
  %828 = vmatprep.subr.mxu0 0.0
  %829 = vmatpush1.msra.mxu0 0.0
  %830 = vmatprep.subr.mxu0 0.0
  %831 = vmatpush1.msra.mxu0 0.0
  %832 = vmatprep.subr.mxu0 0.0
  %833 = vmatpush1.msra.mxu0 0.0
  %834 = vmatprep.subr.mxu0 0.0
  %835 = vmatpush1.msra.mxu0 0.0
  %836 = vmatprep.subr.mxu0 0.0
  %837 = vmatpush1.msra.mxu0 0.0
  %838 = vmatprep.subr.mxu0 0.0
  %839 = vmatpush1.msra.mxu0 0.0
  %840 = vmatprep.subr.mxu0 0.0
  %841 = vmatpush1.msra.mxu0 0.0
  %842 = vmatprep.subr.mxu0 0.0
  %843 = vmatpush1.msra.mxu0 0.0
  %844 = vmatprep.subr.mxu0 0.0
  %845 = vmatpush1.msra.mxu0 0.0
  %846 = vmatprep.subr.mxu0 0.0
  %847 = vmatpush1.msra.mxu0 0.0
  %848 = vmatprep.subr.mxu0 0.0
  %849 = vmatpush1.msra.mxu0 0.0
  %850 = vmatprep.subr.mxu0 0.0
  %851 = vmatpush1.msra.mxu0 0.0
  %852 = vmatprep.subr.mxu0 0.0
  %853 = vmatpush1.msra.mxu0 0.0
  %854 = vmatprep.subr.mxu0 0.0
  %855 = vmatpush1.msra.mxu0 0.0
  %856 = vmatprep.mubr.f32.mxu0 0.0
  %857 = vmatmul.mubr.f32.gmra.mrb[0].mxu0 %v617
  %v858 = vpop.f32.mrb[0].mxu0
  %v859 = vadd.f32 0.0, %v858
  %v860 = vpop.f32.mrb[0].mxu0
  %861 = vdwg.mxu0
  %863 = vrot.lane.b32.xlu0 %v859, 16
  %v864 = vpop.permute.xlu0 %863
  %vm866 = vcmask 257152
  %867 = vst.msk [vmem:[%s6] sm:$0xf] %vm866, %v864
  %vm868 = vcmp.eq.s32.totalorder %v478, 2
  %vm869 = vcmp.eq.s32.totalorder %v479, 2
  %vm870 = vcmp.eq.s32.totalorder %v480, 2
  %vm871 = vcmp.eq.s32.totalorder %v481, 2
  %v872 = vsel %vm868, %v486, 0.0
  %v873 = vsel %vm869, %v487, 0.0
  %v874 = vsel %vm870, %v488, 0.0
  %v875 = vsel %vm871, %v489, 0.0
  %v876 = vsel %vm691, %v490, 0.0
  %v877 = vsel %vm692, %v491, 0.0
  %v878 = vsel %vm693, %v492, 0.0
  %v879 = vsel %vm694, %v493, 0.0
  %v880 = vadd.f32 %v872, %v876
  %v881 = vadd.f32 %v873, %v877
  %v882 = vadd.f32 %v874, %v878
  %v883 = vadd.f32 %v875, %v879
  %884 = vmatprep.subr.mxu0 0.0
  %885 = vmatpush1.msra.mxu0 %v494
  %886 = vmatprep.subr.mxu0 0.0
  %887 = vmatpush1.msra.mxu0 %v495
  %888 = vmatprep.subr.mxu0 0.0
  %889 = vmatpush1.msra.mxu0 %v496
  %890 = vmatprep.subr.mxu0 0.0
  %891 = vmatpush1.msra.mxu0 %v497
  %892 = vmatprep.subr.mxu0 0.0
  %893 = vmatpush1.msra.mxu0 %v498
  %894 = vmatprep.subr.mxu0 0.0
  %895 = vmatpush1.msra.mxu0 %v499
  %896 = vmatprep.subr.mxu0 0.0
  %897 = vmatpush1.msra.mxu0 %v500
  %898 = vmatprep.subr.mxu0 0.0
  %899 = vmatpush1.msra.mxu0 %v501
  %900 = vmatprep.subr.mxu0 0.0
  %901 = vmatpush1.msra.mxu0 %v502
  %902 = vmatprep.subr.mxu0 0.0
  %903 = vmatpush1.msra.mxu0 %v503
  %904 = vmatprep.subr.mxu0 0.0
  %905 = vmatpush1.msra.mxu0 %v504
  %906 = vmatprep.subr.mxu0 0.0
  %907 = vmatpush1.msra.mxu0 %v505
  %908 = vmatprep.subr.mxu0 0.0
  %909 = vmatpush1.msra.mxu0 %v506
  %910 = vmatprep.subr.mxu0 0.0
  %911 = vmatpush1.msra.mxu0 %v507
  %912 = vmatprep.subr.mxu0 0.0
  %913 = vmatpush1.msra.mxu0 %v508
  %914 = vmatprep.subr.mxu0 0.0
  %915 = vmatpush1.msra.mxu0 %v509
  %916 = vmatprep.subr.mxu0 0.0
  %917 = vmatpush1.msra.mxu0 0.0
  %918 = vmatprep.subr.mxu0 0.0
  %919 = vmatpush1.msra.mxu0 0.0
  %920 = vmatprep.subr.mxu0 0.0
  %921 = vmatpush1.msra.mxu0 0.0
  %922 = vmatprep.subr.mxu0 0.0
  %923 = vmatpush1.msra.mxu0 0.0
  %924 = vmatprep.subr.mxu0 0.0
  %925 = vmatpush1.msra.mxu0 0.0
  %926 = vmatprep.subr.mxu0 0.0
  %927 = vmatpush1.msra.mxu0 0.0
  %928 = vmatprep.subr.mxu0 0.0
  %929 = vmatpush1.msra.mxu0 0.0
  %930 = vmatprep.subr.mxu0 0.0
  %931 = vmatpush1.msra.mxu0 0.0
  %932 = vmatprep.subr.mxu0 0.0
  %933 = vmatpush1.msra.mxu0 0.0
  %934 = vmatprep.subr.mxu0 0.0
  %935 = vmatpush1.msra.mxu0 0.0
  %936 = vmatprep.subr.mxu0 0.0
  %937 = vmatpush1.msra.mxu0 0.0
  %938 = vmatprep.subr.mxu0 0.0
  %939 = vmatpush1.msra.mxu0 0.0
  %940 = vmatprep.subr.mxu0 0.0
  %941 = vmatpush1.msra.mxu0 0.0
  %942 = vmatprep.subr.mxu0 0.0
  %943 = vmatpush1.msra.mxu0 0.0
  %944 = vmatprep.subr.mxu0 0.0
  %945 = vmatpush1.msra.mxu0 0.0
  %946 = vmatprep.subr.mxu0 0.0
  %947 = vmatpush1.msra.mxu0 0.0
  %948 = vmatprep.mubr.f32.mxu0 0.0
  %949 = vmatmul.mubr.f32.gmra.mrb[0].mxu0 %v880
  %v950 = vpop.f32.mrb[0].mxu0
  %v951 = vadd.f32 0.0, %v950
  %v952 = vpop.f32.mrb[0].mxu0
  %953 = vmatprep.mubr.f32.mxu0 0.0
  %954 = vmatmul.mubr.f32.gmra.mrb[0].mxu0 %v881
  %v955 = vpop.f32.mrb[0].mxu0
  %v956 = vadd.f32 0.0, %v955
  %v957 = vpop.f32.mrb[0].mxu0
  %958 = vmatprep.mubr.f32.mxu0 0.0
  %959 = vmatmul.mubr.f32.gmra.mrb[0].mxu0 %v882
  %v960 = vpop.f32.mrb[0].mxu0
  %v961 = vadd.f32 0.0, %v960
  %v962 = vpop.f32.mrb[0].mxu0
  %963 = vmatprep.mubr.f32.mxu0 0.0
  %964 = vmatmul.mubr.f32.gmra.mrb[0].mxu0 %v883
  %v965 = vpop.f32.mrb[0].mxu0
  %v966 = vadd.f32 0.0, %v965
  %v967 = vpop.f32.mrb[0].mxu0
  %968 = vdwg.mxu0
  %969 = vmatprep.subr.mxu0 0.0
  %970 = vmatpush1.msra.mxu0 %v951
  %971 = vmatprep.subr.mxu0 0.0
  %972 = vmatpush1.msra.mxu0 %v956
  %973 = vmatprep.subr.mxu0 0.0
  %974 = vmatpush1.msra.mxu0 %v961
  %975 = vmatprep.subr.mxu0 0.0
  %976 = vmatpush1.msra.mxu0 %v966
  %977 = vmatprep.subr.mxu0 0.0
  %978 = vmatpush1.msra.mxu0 0.0
  %979 = vmatprep.subr.mxu0 0.0
  %980 = vmatpush1.msra.mxu0 0.0
  %981 = vmatprep.subr.mxu0 0.0
  %982 = vmatpush1.msra.mxu0 0.0
  %983 = vmatprep.subr.mxu0 0.0
  %984 = vmatpush1.msra.mxu0 0.0
  %985 = vmatprep.subr.mxu0 0.0
  %986 = vmatpush1.msra.mxu0 0.0
  %987 = vmatprep.subr.mxu0 0.0
  %988 = vmatpush1.msra.mxu0 0.0
  %989 = vmatprep.subr.mxu0 0.0
  %990 = vmatpush1.msra.mxu0 0.0
  %991 = vmatprep.subr.mxu0 0.0
  %992 = vmatpush1.msra.mxu0 0.0
  %993 = vmatprep.subr.mxu0 0.0
  %994 = vmatpush1.msra.mxu0 0.0
  %995 = vmatprep.subr.mxu0 0.0
  %996 = vmatpush1.msra.mxu0 0.0
  %997 = vmatprep.subr.mxu0 0.0
  %998 = vmatpush1.msra.mxu0 0.0
  %999 = vmatprep.subr.mxu0 0.0
  %1000 = vmatpush1.msra.mxu0 0.0
  %1001 = vmatprep.subr.mxu0 0.0
  %1002 = vmatpush1.msra.mxu0 0.0
  %1003 = vmatprep.subr.mxu0 0.0
  %1004 = vmatpush1.msra.mxu0 0.0
  %1005 = vmatprep.subr.mxu0 0.0
  %1006 = vmatpush1.msra.mxu0 0.0
  %1007 = vmatprep.subr.mxu0 0.0
  %1008 = vmatpush1.msra.mxu0 0.0
  %1009 = vmatprep.subr.mxu0 0.0
  %1010 = vmatpush1.msra.mxu0 0.0
  %1011 = vmatprep.subr.mxu0 0.0
  %1012 = vmatpush1.msra.mxu0 0.0
  %1013 = vmatprep.subr.mxu0 0.0
  %1014 = vmatpush1.msra.mxu0 0.0
  %1015 = vmatprep.subr.mxu0 0.0
  %1016 = vmatpush1.msra.mxu0 0.0
  %1017 = vmatprep.subr.mxu0 0.0
  %1018 = vmatpush1.msra.mxu0 0.0
  %1019 = vmatprep.subr.mxu0 0.0
  %1020 = vmatpush1.msra.mxu0 0.0
  %1021 = vmatprep.subr.mxu0 0.0
  %1022 = vmatpush1.msra.mxu0 0.0
  %1023 = vmatprep.subr.mxu0 0.0
  %1024 = vmatpush1.msra.mxu0 0.0
  %1025 = vmatprep.subr.mxu0 0.0
  %1026 = vmatpush1.msra.mxu0 0.0
  %1027 = vmatprep.subr.mxu0 0.0
  %1028 = vmatpush1.msra.mxu0 0.0
  %1029 = vmatprep.subr.mxu0 0.0
  %1030 = vmatpush1.msra.mxu0 0.0
  %1031 = vmatprep.subr.mxu0 0.0
  %1032 = vmatpush1.msra.mxu0 0.0
  %1033 = vmatprep.mubr.f32.mxu0 0.0
  %1034 = vmatmul.mubr.f32.gmra.mrb[0].mxu0 %v617
  %v1035 = vpop.f32.mrb[0].mxu0
  %v1036 = vadd.f32 0.0, %v1035
  %v1037 = vpop.f32.mrb[0].mxu0
  %1038 = vdwg.mxu0
  %1040 = vrot.lane.b32.xlu0 %v1036, 32
  %v1041 = vpop.permute.xlu0 %1040
  %vm1043 = vcmask 388352
  %1044 = vst.msk [vmem:[%s6] sm:$0xf] %vm1043, %v1041
  %vm1045 = vcmp.eq.s32.totalorder %v478, 3
  %vm1046 = vcmp.eq.s32.totalorder %v479, 3
  %vm1047 = vcmp.eq.s32.totalorder %v480, 3
  %vm1048 = vcmp.eq.s32.totalorder %v481, 3
  %v1049 = vsel %vm1045, %v486, 0.0
  %v1050 = vsel %vm1046, %v487, 0.0
  %v1051 = vsel %vm1047, %v488, 0.0
  %v1052 = vsel %vm1048, %v489, 0.0
  %v1053 = vsel %vm868, %v490, 0.0
  %v1054 = vsel %vm869, %v491, 0.0
  %v1055 = vsel %vm870, %v492, 0.0
  %v1056 = vsel %vm871, %v493, 0.0
  %v1057 = vadd.f32 %v1049, %v1053
  %v1058 = vadd.f32 %v1050, %v1054
  %v1059 = vadd.f32 %v1051, %v1055
  %v1060 = vadd.f32 %v1052, %v1056
  %1061 = vmatprep.subr.mxu0 0.0
  %1062 = vmatpush1.msra.mxu0 %v494
  %1063 = vmatprep.subr.mxu0 0.0
  %1064 = vmatpush1.msra.mxu0 %v495
  %1065 = vmatprep.subr.mxu0 0.0
  %1066 = vmatpush1.msra.mxu0 %v496
  %1067 = vmatprep.subr.mxu0 0.0
  %1068 = vmatpush1.msra.mxu0 %v497
  %1069 = vmatprep.subr.mxu0 0.0
  %1070 = vmatpush1.msra.mxu0 %v498
  %1071 = vmatprep.subr.mxu0 0.0
  %1072 = vmatpush1.msra.mxu0 %v499
  %1073 = vmatprep.subr.mxu0 0.0
  %1074 = vmatpush1.msra.mxu0 %v500
  %1075 = vmatprep.subr.mxu0 0.0
  %1076 = vmatpush1.msra.mxu0 %v501
  %1077 = vmatprep.subr.mxu0 0.0
  %1078 = vmatpush1.msra.mxu0 %v502
  %1079 = vmatprep.subr.mxu0 0.0
  %1080 = vmatpush1.msra.mxu0 %v503
  %1081 = vmatprep.subr.mxu0 0.0
  %1082 = vmatpush1.msra.mxu0 %v504
  %1083 = vmatprep.subr.mxu0 0.0
  %1084 = vmatpush1.msra.mxu0 %v505
  %1085 = vmatprep.subr.mxu0 0.0
  %1086 = vmatpush1.msra.mxu0 %v506
  %1087 = vmatprep.subr.mxu0 0.0
  %1088 = vmatpush1.msra.mxu0 %v507
  %1089 = vmatprep.subr.mxu0 0.0
  %1090 = vmatpush1.msra.mxu0 %v508
  %1091 = vmatprep.subr.mxu0 0.0
  %1092 = vmatpush1.msra.mxu0 %v509
  %1093 = vmatprep.subr.mxu0 0.0
  %1094 = vmatpush1.msra.mxu0 0.0
  %1095 = vmatprep.subr.mxu0 0.0
  %1096 = vmatpush1.msra.mxu0 0.0
  %1097 = vmatprep.subr.mxu0 0.0
  %1098 = vmatpush1.msra.mxu0 0.0
  %1099 = vmatprep.subr.mxu0 0.0
  %1100 = vmatpush1.msra.mxu0 0.0
  %1101 = vmatprep.subr.mxu0 0.0
  %1102 = vmatpush1.msra.mxu0 0.0
  %1103 = vmatprep.subr.mxu0 0.0
  %1104 = vmatpush1.msra.mxu0 0.0
  %1105 = vmatprep.subr.mxu0 0.0
  %1106 = vmatpush1.msra.mxu0 0.0
  %1107 = vmatprep.subr.mxu0 0.0
  %1108 = vmatpush1.msra.mxu0 0.0
  %1109 = vmatprep.subr.mxu0 0.0
  %1110 = vmatpush1.msra.mxu0 0.0
  %1111 = vmatprep.subr.mxu0 0.0
  %1112 = vmatpush1.msra.mxu0 0.0
  %1113 = vmatprep.subr.mxu0 0.0
  %1114 = vmatpush1.msra.mxu0 0.0
  %1115 = vmatprep.subr.mxu0 0.0
  %1116 = vmatpush1.msra.mxu0 0.0
  %1117 = vmatprep.subr.mxu0 0.0
  %1118 = vmatpush1.msra.mxu0 0.0
  %1119 = vmatprep.subr.mxu0 0.0
  %1120 = vmatpush1.msra.mxu0 0.0
  %1121 = vmatprep.subr.mxu0 0.0
  %1122 = vmatpush1.msra.mxu0 0.0
  %1123 = vmatprep.subr.mxu0 0.0
  %1124 = vmatpush1.msra.mxu0 0.0
  %1125 = vmatprep.mubr.f32.mxu0 0.0
  %1126 = vmatmul.mubr.f32.gmra.mrb[0].mxu0 %v1057
  %v1127 = vpop.f32.mrb[0].mxu0
  %v1128 = vadd.f32 0.0, %v1127
  %v1129 = vpop.f32.mrb[0].mxu0
  %1130 = vmatprep.mubr.f32.mxu0 0.0
  %1131 = vmatmul.mubr.f32.gmra.mrb[0].mxu0 %v1058
  %v1132 = vpop.f32.mrb[0].mxu0
  %v1133 = vadd.f32 0.0, %v1132
  %v1134 = vpop.f32.mrb[0].mxu0
  %1135 = vmatprep.mubr.f32.mxu0 0.0
  %1136 = vmatmul.mubr.f32.gmra.mrb[0].mxu0 %v1059
  %v1137 = vpop.f32.mrb[0].mxu0
  %v1138 = vadd.f32 0.0, %v1137
  %v1139 = vpop.f32.mrb[0].mxu0
  %1140 = vmatprep.mubr.f32.mxu0 0.0
  %1141 = vmatmul.mubr.f32.gmra.mrb[0].mxu0 %v1060
  %v1142 = vpop.f32.mrb[0].mxu0
  %v1143 = vadd.f32 0.0, %v1142
  %v1144 = vpop.f32.mrb[0].mxu0
  %1145 = vdwg.mxu0
  %1146 = vmatprep.subr.mxu0 0.0
  %1147 = vmatpush1.msra.mxu0 %v1128
  %1148 = vmatprep.subr.mxu0 0.0
  %1149 = vmatpush1.msra.mxu0 %v1133
  %1150 = vmatprep.subr.mxu0 0.0
  %1151 = vmatpush1.msra.mxu0 %v1138
  %1152 = vmatprep.subr.mxu0 0.0
  %1153 = vmatpush1.msra.mxu0 %v1143
  %1154 = vmatprep.subr.mxu0 0.0
  %1155 = vmatpush1.msra.mxu0 0.0
  %1156 = vmatprep.subr.mxu0 0.0
  %1157 = vmatpush1.msra.mxu0 0.0
  %1158 = vmatprep.subr.mxu0 0.0
  %1159 = vmatpush1.msra.mxu0 0.0
  %1160 = vmatprep.subr.mxu0 0.0
  %1161 = vmatpush1.msra.mxu0 0.0
  %1162 = vmatprep.subr.mxu0 0.0
  %1163 = vmatpush1.msra.mxu0 0.0
  %1164 = vmatprep.subr.mxu0 0.0
  %1165 = vmatpush1.msra.mxu0 0.0
  %1166 = vmatprep.subr.mxu0 0.0
  %1167 = vmatpush1.msra.mxu0 0.0
  %1168 = vmatprep.subr.mxu0 0.0
  %1169 = vmatpush1.msra.mxu0 0.0
  %1170 = vmatprep.subr.mxu0 0.0
  %1171 = vmatpush1.msra.mxu0 0.0
  %1172 = vmatprep.subr.mxu0 0.0
  %1173 = vmatpush1.msra.mxu0 0.0
  %1174 = vmatprep.subr.mxu0 0.0
  %1175 = vmatpush1.msra.mxu0 0.0
  %1176 = vmatprep.subr.mxu0 0.0
  %1177 = vmatpush1.msra.mxu0 0.0
  %1178 = vmatprep.subr.mxu0 0.0
  %1179 = vmatpush1.msra.mxu0 0.0
  %1180 = vmatprep.subr.mxu0 0.0
  %1181 = vmatpush1.msra.mxu0 0.0
  %1182 = vmatprep.subr.mxu0 0.0
  %1183 = vmatpush1.msra.mxu0 0.0
  %1184 = vmatprep.subr.mxu0 0.0
  %1185 = vmatpush1.msra.mxu0 0.0
  %1186 = vmatprep.subr.mxu0 0.0
  %1187 = vmatpush1.msra.mxu0 0.0
  %1188 = vmatprep.subr.mxu0 0.0
  %1189 = vmatpush1.msra.mxu0 0.0
  %1190 = vmatprep.subr.mxu0 0.0
  %1191 = vmatpush1.msra.mxu0 0.0
  %1192 = vmatprep.subr.mxu0 0.0
  %1193 = vmatpush1.msra.mxu0 0.0
  %1194 = vmatprep.subr.mxu0 0.0
  %1195 = vmatpush1.msra.mxu0 0.0
  %1196 = vmatprep.subr.mxu0 0.0
  %1197 = vmatpush1.msra.mxu0 0.0
  %1198 = vmatprep.subr.mxu0 0.0
  %1199 = vmatpush1.msra.mxu0 0.0
  %1200 = vmatprep.subr.mxu0 0.0
  %1201 = vmatpush1.msra.mxu0 0.0
  %1202 = vmatprep.subr.mxu0 0.0
  %1203 = vmatpush1.msra.mxu0 0.0
  %1204 = vmatprep.subr.mxu0 0.0
  %1205 = vmatpush1.msra.mxu0 0.0
  %1206 = vmatprep.subr.mxu0 0.0
  %1207 = vmatpush1.msra.mxu0 0.0
  %1208 = vmatprep.subr.mxu0 0.0
  %1209 = vmatpush1.msra.mxu0 0.0
  %1210 = vmatprep.mubr.f32.mxu0 0.0
  %1211 = vmatmul.mubr.f32.gmra.mrb[0].mxu0 %v617
  %v1212 = vpop.f32.mrb[0].mxu0
  %v1213 = vadd.f32 0.0, %v1212
  %v1214 = vpop.f32.mrb[0].mxu0
  %1215 = vdwg.mxu0
  %1217 = vrot.lane.b32.xlu0 %v1213, 48
  %v1218 = vpop.permute.xlu0 %1217
  %vm1220 = vcmask 519552
  %1221 = vst.msk [vmem:[%s6] sm:$0xf] %vm1220, %v1218
  %vm1222 = vcmp.eq.s32.totalorder %v478, 4
  %vm1223 = vcmp.eq.s32.totalorder %v479, 4
  %vm1224 = vcmp.eq.s32.totalorder %v480, 4
  %vm1225 = vcmp.eq.s32.totalorder %v481, 4
  %v1226 = vsel %vm1222, %v486, 0.0
  %v1227 = vsel %vm1223, %v487, 0.0
  %v1228 = vsel %vm1224, %v488, 0.0
  %v1229 = vsel %vm1225, %v489, 0.0
  %v1230 = vsel %vm1045, %v490, 0.0
  %v1231 = vsel %vm1046, %v491, 0.0
  %v1232 = vsel %vm1047, %v492, 0.0
  %v1233 = vsel %vm1048, %v493, 0.0
  %v1234 = vadd.f32 %v1226, %v1230
  %v1235 = vadd.f32 %v1227, %v1231
  %v1236 = vadd.f32 %v1228, %v1232
  %v1237 = vadd.f32 %v1229, %v1233
  %1238 = vmatprep.subr.mxu0 0.0
  %1239 = vmatpush1.msra.mxu0 %v494
  %1240 = vmatprep.subr.mxu0 0.0
  %1241 = vmatpush1.msra.mxu0 %v495
  %1242 = vmatprep.subr.mxu0 0.0
  %1243 = vmatpush1.msra.mxu0 %v496
  %1244 = vmatprep.subr.mxu0 0.0
  %1245 = vmatpush1.msra.mxu0 %v497
  %1246 = vmatprep.subr.mxu0 0.0
  %1247 = vmatpush1.msra.mxu0 %v498
  %1248 = vmatprep.subr.mxu0 0.0
  %1249 = vmatpush1.msra.mxu0 %v499
  %1250 = vmatprep.subr.mxu0 0.0
  %1251 = vmatpush1.msra.mxu0 %v500
  %1252 = vmatprep.subr.mxu0 0.0
  %1253 = vmatpush1.msra.mxu0 %v501
  %1254 = vmatprep.subr.mxu0 0.0
  %1255 = vmatpush1.msra.mxu0 %v502
  %1256 = vmatprep.subr.mxu0 0.0
  %1257 = vmatpush1.msra.mxu0 %v503
  %1258 = vmatprep.subr.mxu0 0.0
  %1259 = vmatpush1.msra.mxu0 %v504
  %1260 = vmatprep.subr.mxu0 0.0
  %1261 = vmatpush1.msra.mxu0 %v505
  %1262 = vmatprep.subr.mxu0 0.0
  %1263 = vmatpush1.msra.mxu0 %v506
  %1264 = vmatprep.subr.mxu0 0.0
  %1265 = vmatpush1.msra.mxu0 %v507
  %1266 = vmatprep.subr.mxu0 0.0
  %1267 = vmatpush1.msra.mxu0 %v508
  %1268 = vmatprep.subr.mxu0 0.0
  %1269 = vmatpush1.msra.mxu0 %v509
  %1270 = vmatprep.subr.mxu0 0.0
  %1271 = vmatpush1.msra.mxu0 0.0
  %1272 = vmatprep.subr.mxu0 0.0
  %1273 = vmatpush1.msra.mxu0 0.0
  %1274 = vmatprep.subr.mxu0 0.0
  %1275 = vmatpush1.msra.mxu0 0.0
  %1276 = vmatprep.subr.mxu0 0.0
  %1277 = vmatpush1.msra.mxu0 0.0
  %1278 = vmatprep.subr.mxu0 0.0
  %1279 = vmatpush1.msra.mxu0 0.0
  %1280 = vmatprep.subr.mxu0 0.0
  %1281 = vmatpush1.msra.mxu0 0.0
  %1282 = vmatprep.subr.mxu0 0.0
  %1283 = vmatpush1.msra.mxu0 0.0
  %1284 = vmatprep.subr.mxu0 0.0
  %1285 = vmatpush1.msra.mxu0 0.0
  %1286 = vmatprep.subr.mxu0 0.0
  %1287 = vmatpush1.msra.mxu0 0.0
  %1288 = vmatprep.subr.mxu0 0.0
  %1289 = vmatpush1.msra.mxu0 0.0
  %1290 = vmatprep.subr.mxu0 0.0
  %1291 = vmatpush1.msra.mxu0 0.0
  %1292 = vmatprep.subr.mxu0 0.0
  %1293 = vmatpush1.msra.mxu0 0.0
  %1294 = vmatprep.subr.mxu0 0.0
  %1295 = vmatpush1.msra.mxu0 0.0
  %1296 = vmatprep.subr.mxu0 0.0
  %1297 = vmatpush1.msra.mxu0 0.0
  %1298 = vmatprep.subr.mxu0 0.0
  %1299 = vmatpush1.msra.mxu0 0.0
  %1300 = vmatprep.subr.mxu0 0.0
  %1301 = vmatpush1.msra.mxu0 0.0
  %1302 = vmatprep.mubr.f32.mxu0 0.0
  %1303 = vmatmul.mubr.f32.gmra.mrb[0].mxu0 %v1234
  %v1304 = vpop.f32.mrb[0].mxu0
  %v1305 = vadd.f32 0.0, %v1304
  %v1306 = vpop.f32.mrb[0].mxu0
  %1307 = vmatprep.mubr.f32.mxu0 0.0
  %1308 = vmatmul.mubr.f32.gmra.mrb[0].mxu0 %v1235
  %v1309 = vpop.f32.mrb[0].mxu0
  %v1310 = vadd.f32 0.0, %v1309
  %v1311 = vpop.f32.mrb[0].mxu0
  %1312 = vmatprep.mubr.f32.mxu0 0.0
  %1313 = vmatmul.mubr.f32.gmra.mrb[0].mxu0 %v1236
  %v1314 = vpop.f32.mrb[0].mxu0
  %v1315 = vadd.f32 0.0, %v1314
  %v1316 = vpop.f32.mrb[0].mxu0
  %1317 = vmatprep.mubr.f32.mxu0 0.0
  %1318 = vmatmul.mubr.f32.gmra.mrb[0].mxu0 %v1237
  %v1319 = vpop.f32.mrb[0].mxu0
  %v1320 = vadd.f32 0.0, %v1319
  %v1321 = vpop.f32.mrb[0].mxu0
  %1322 = vdwg.mxu0
  %1323 = vmatprep.subr.mxu0 0.0
  %1324 = vmatpush1.msra.mxu0 %v1305
  %1325 = vmatprep.subr.mxu0 0.0
  %1326 = vmatpush1.msra.mxu0 %v1310
  %1327 = vmatprep.subr.mxu0 0.0
  %1328 = vmatpush1.msra.mxu0 %v1315
  %1329 = vmatprep.subr.mxu0 0.0
  %1330 = vmatpush1.msra.mxu0 %v1320
  %1331 = vmatprep.subr.mxu0 0.0
  %1332 = vmatpush1.msra.mxu0 0.0
  %1333 = vmatprep.subr.mxu0 0.0
  %1334 = vmatpush1.msra.mxu0 0.0
  %1335 = vmatprep.subr.mxu0 0.0
  %1336 = vmatpush1.msra.mxu0 0.0
  %1337 = vmatprep.subr.mxu0 0.0
  %1338 = vmatpush1.msra.mxu0 0.0
  %1339 = vmatprep.subr.mxu0 0.0
  %1340 = vmatpush1.msra.mxu0 0.0
  %1341 = vmatprep.subr.mxu0 0.0
  %1342 = vmatpush1.msra.mxu0 0.0
  %1343 = vmatprep.subr.mxu0 0.0
  %1344 = vmatpush1.msra.mxu0 0.0
  %1345 = vmatprep.subr.mxu0 0.0
  %1346 = vmatpush1.msra.mxu0 0.0
  %1347 = vmatprep.subr.mxu0 0.0
  %1348 = vmatpush1.msra.mxu0 0.0
  %1349 = vmatprep.subr.mxu0 0.0
  %1350 = vmatpush1.msra.mxu0 0.0
  %1351 = vmatprep.subr.mxu0 0.0
  %1352 = vmatpush1.msra.mxu0 0.0
  %1353 = vmatprep.subr.mxu0 0.0
  %1354 = vmatpush1.msra.mxu0 0.0
  %1355 = vmatprep.subr.mxu0 0.0
  %1356 = vmatpush1.msra.mxu0 0.0
  %1357 = vmatprep.subr.mxu0 0.0
  %1358 = vmatpush1.msra.mxu0 0.0
  %1359 = vmatprep.subr.mxu0 0.0
  %1360 = vmatpush1.msra.mxu0 0.0
  %1361 = vmatprep.subr.mxu0 0.0
  %1362 = vmatpush1.msra.mxu0 0.0
  %1363 = vmatprep.subr.mxu0 0.0
  %1364 = vmatpush1.msra.mxu0 0.0
  %1365 = vmatprep.subr.mxu0 0.0
  %1366 = vmatpush1.msra.mxu0 0.0
  %1367 = vmatprep.subr.mxu0 0.0
  %1368 = vmatpush1.msra.mxu0 0.0
  %1369 = vmatprep.subr.mxu0 0.0
  %1370 = vmatpush1.msra.mxu0 0.0
  %1371 = vmatprep.subr.mxu0 0.0
  %1372 = vmatpush1.msra.mxu0 0.0
  %1373 = vmatprep.subr.mxu0 0.0
  %1374 = vmatpush1.msra.mxu0 0.0
  %1375 = vmatprep.subr.mxu0 0.0
  %1376 = vmatpush1.msra.mxu0 0.0
  %1377 = vmatprep.subr.mxu0 0.0
  %1378 = vmatpush1.msra.mxu0 0.0
  %1379 = vmatprep.subr.mxu0 0.0
  %1380 = vmatpush1.msra.mxu0 0.0
  %1381 = vmatprep.subr.mxu0 0.0
  %1382 = vmatpush1.msra.mxu0 0.0
  %1383 = vmatprep.subr.mxu0 0.0
  %1384 = vmatpush1.msra.mxu0 0.0
  %1385 = vmatprep.subr.mxu0 0.0
  %1386 = vmatpush1.msra.mxu0 0.0
  %1387 = vmatprep.mubr.f32.mxu0 0.0
  %1388 = vmatmul.mubr.f32.gmra.mrb[0].mxu0 %v617
  %v1389 = vpop.f32.mrb[0].mxu0
  %v1390 = vadd.f32 0.0, %v1389
  %v1391 = vpop.f32.mrb[0].mxu0
  %1392 = vdwg.mxu0
  %1394 = vrot.lane.b32.xlu0 %v1390, 64
  %v1395 = vpop.permute.xlu0 %1394
  %vm1397 = vcmask 650752
  %1398 = vst.msk [vmem:[%s6] sm:$0xf] %vm1397, %v1395
  %vm1399 = vcmp.eq.s32.totalorder %v478, 5
  %vm1400 = vcmp.eq.s32.totalorder %v479, 5
  %vm1401 = vcmp.eq.s32.totalorder %v480, 5
  %vm1402 = vcmp.eq.s32.totalorder %v481, 5
  %v1403 = vsel %vm1399, %v486, 0.0
  %v1404 = vsel %vm1400, %v487, 0.0
  %v1405 = vsel %vm1401, %v488, 0.0
  %v1406 = vsel %vm1402, %v489, 0.0
  %v1407 = vsel %vm1222, %v490, 0.0
  %v1408 = vsel %vm1223, %v491, 0.0
  %v1409 = vsel %vm1224, %v492, 0.0
  %v1410 = vsel %vm1225, %v493, 0.0
  %v1411 = vadd.f32 %v1403, %v1407
  %v1412 = vadd.f32 %v1404, %v1408
  %v1413 = vadd.f32 %v1405, %v1409
  %v1414 = vadd.f32 %v1406, %v1410
  %1415 = vmatprep.subr.mxu0 0.0
  %1416 = vmatpush1.msra.mxu0 %v494
  %1417 = vmatprep.subr.mxu0 0.0
  %1418 = vmatpush1.msra.mxu0 %v495
  %1419 = vmatprep.subr.mxu0 0.0
  %1420 = vmatpush1.msra.mxu0 %v496
  %1421 = vmatprep.subr.mxu0 0.0
  %1422 = vmatpush1.msra.mxu0 %v497
  %1423 = vmatprep.subr.mxu0 0.0
  %1424 = vmatpush1.msra.mxu0 %v498
  %1425 = vmatprep.subr.mxu0 0.0
  %1426 = vmatpush1.msra.mxu0 %v499
  %1427 = vmatprep.subr.mxu0 0.0
  %1428 = vmatpush1.msra.mxu0 %v500
  %1429 = vmatprep.subr.mxu0 0.0
  %1430 = vmatpush1.msra.mxu0 %v501
  %1431 = vmatprep.subr.mxu0 0.0
  %1432 = vmatpush1.msra.mxu0 %v502
  %1433 = vmatprep.subr.mxu0 0.0
  %1434 = vmatpush1.msra.mxu0 %v503
  %1435 = vmatprep.subr.mxu0 0.0
  %1436 = vmatpush1.msra.mxu0 %v504
  %1437 = vmatprep.subr.mxu0 0.0
  %1438 = vmatpush1.msra.mxu0 %v505
  %1439 = vmatprep.subr.mxu0 0.0
  %1440 = vmatpush1.msra.mxu0 %v506
  %1441 = vmatprep.subr.mxu0 0.0
  %1442 = vmatpush1.msra.mxu0 %v507
  %1443 = vmatprep.subr.mxu0 0.0
  %1444 = vmatpush1.msra.mxu0 %v508
  %1445 = vmatprep.subr.mxu0 0.0
  %1446 = vmatpush1.msra.mxu0 %v509
  %1447 = vmatprep.subr.mxu0 0.0
  %1448 = vmatpush1.msra.mxu0 0.0
  %1449 = vmatprep.subr.mxu0 0.0
  %1450 = vmatpush1.msra.mxu0 0.0
  %1451 = vmatprep.subr.mxu0 0.0
  %1452 = vmatpush1.msra.mxu0 0.0
  %1453 = vmatprep.subr.mxu0 0.0
  %1454 = vmatpush1.msra.mxu0 0.0
  %1455 = vmatprep.subr.mxu0 0.0
  %1456 = vmatpush1.msra.mxu0 0.0
  %1457 = vmatprep.subr.mxu0 0.0
  %1458 = vmatpush1.msra.mxu0 0.0
  %1459 = vmatprep.subr.mxu0 0.0
  %1460 = vmatpush1.msra.mxu0 0.0
  %1461 = vmatprep.subr.mxu0 0.0
  %1462 = vmatpush1.msra.mxu0 0.0
  %1463 = vmatprep.subr.mxu0 0.0
  %1464 = vmatpush1.msra.mxu0 0.0
  %1465 = vmatprep.subr.mxu0 0.0
  %1466 = vmatpush1.msra.mxu0 0.0
  %1467 = vmatprep.subr.mxu0 0.0
  %1468 = vmatpush1.msra.mxu0 0.0
  %1469 = vmatprep.subr.mxu0 0.0
  %1470 = vmatpush1.msra.mxu0 0.0
  %1471 = vmatprep.subr.mxu0 0.0
  %1472 = vmatpush1.msra.mxu0 0.0
  %1473 = vmatprep.subr.mxu0 0.0
  %1474 = vmatpush1.msra.mxu0 0.0
  %1475 = vmatprep.subr.mxu0 0.0
  %1476 = vmatpush1.msra.mxu0 0.0
  %1477 = vmatprep.subr.mxu0 0.0
  %1478 = vmatpush1.msra.mxu0 0.0
  %1479 = vmatprep.mubr.f32.mxu0 0.0
  %1480 = vmatmul.mubr.f32.gmra.mrb[0].mxu0 %v1411
  %v1481 = vpop.f32.mrb[0].mxu0
  %v1482 = vadd.f32 0.0, %v1481
  %v1483 = vpop.f32.mrb[0].mxu0
  %1484 = vmatprep.mubr.f32.mxu0 0.0
  %1485 = vmatmul.mubr.f32.gmra.mrb[0].mxu0 %v1412
  %v1486 = vpop.f32.mrb[0].mxu0
  %v1487 = vadd.f32 0.0, %v1486
  %v1488 = vpop.f32.mrb[0].mxu0
  %1489 = vmatprep.mubr.f32.mxu0 0.0
  %1490 = vmatmul.mubr.f32.gmra.mrb[0].mxu0 %v1413
  %v1491 = vpop.f32.mrb[0].mxu0
  %v1492 = vadd.f32 0.0, %v1491
  %v1493 = vpop.f32.mrb[0].mxu0
  %1494 = vmatprep.mubr.f32.mxu0 0.0
  %1495 = vmatmul.mubr.f32.gmra.mrb[0].mxu0 %v1414
  %v1496 = vpop.f32.mrb[0].mxu0
  %v1497 = vadd.f32 0.0, %v1496
  %v1498 = vpop.f32.mrb[0].mxu0
  %1499 = vdwg.mxu0
  %1500 = vmatprep.subr.mxu0 0.0
  %1501 = vmatpush1.msra.mxu0 %v1482
  %1502 = vmatprep.subr.mxu0 0.0
  %1503 = vmatpush1.msra.mxu0 %v1487
  %1504 = vmatprep.subr.mxu0 0.0
  %1505 = vmatpush1.msra.mxu0 %v1492
  %1506 = vmatprep.subr.mxu0 0.0
  %1507 = vmatpush1.msra.mxu0 %v1497
  %1508 = vmatprep.subr.mxu0 0.0
  %1509 = vmatpush1.msra.mxu0 0.0
  %1510 = vmatprep.subr.mxu0 0.0
  %1511 = vmatpush1.msra.mxu0 0.0
  %1512 = vmatprep.subr.mxu0 0.0
  %1513 = vmatpush1.msra.mxu0 0.0
  %1514 = vmatprep.subr.mxu0 0.0
  %1515 = vmatpush1.msra.mxu0 0.0
  %1516 = vmatprep.subr.mxu0 0.0
  %1517 = vmatpush1.msra.mxu0 0.0
  %1518 = vmatprep.subr.mxu0 0.0
  %1519 = vmatpush1.msra.mxu0 0.0
  %1520 = vmatprep.subr.mxu0 0.0
  %1521 = vmatpush1.msra.mxu0 0.0
  %1522 = vmatprep.subr.mxu0 0.0
  %1523 = vmatpush1.msra.mxu0 0.0
  %1524 = vmatprep.subr.mxu0 0.0
  %1525 = vmatpush1.msra.mxu0 0.0
  %1526 = vmatprep.subr.mxu0 0.0
  %1527 = vmatpush1.msra.mxu0 0.0
  %1528 = vmatprep.subr.mxu0 0.0
  %1529 = vmatpush1.msra.mxu0 0.0
  %1530 = vmatprep.subr.mxu0 0.0
  %1531 = vmatpush1.msra.mxu0 0.0
  %1532 = vmatprep.subr.mxu0 0.0
  %1533 = vmatpush1.msra.mxu0 0.0
  %1534 = vmatprep.subr.mxu0 0.0
  %1535 = vmatpush1.msra.mxu0 0.0
  %1536 = vmatprep.subr.mxu0 0.0
  %1537 = vmatpush1.msra.mxu0 0.0
  %1538 = vmatprep.subr.mxu0 0.0
  %1539 = vmatpush1.msra.mxu0 0.0
  %1540 = vmatprep.subr.mxu0 0.0
  %1541 = vmatpush1.msra.mxu0 0.0
  %1542 = vmatprep.subr.mxu0 0.0
  %1543 = vmatpush1.msra.mxu0 0.0
  %1544 = vmatprep.subr.mxu0 0.0
  %1545 = vmatpush1.msra.mxu0 0.0
  %1546 = vmatprep.subr.mxu0 0.0
  %1547 = vmatpush1.msra.mxu0 0.0
  %1548 = vmatprep.subr.mxu0 0.0
  %1549 = vmatpush1.msra.mxu0 0.0
  %1550 = vmatprep.subr.mxu0 0.0
  %1551 = vmatpush1.msra.mxu0 0.0
  %1552 = vmatprep.subr.mxu0 0.0
  %1553 = vmatpush1.msra.mxu0 0.0
  %1554 = vmatprep.subr.mxu0 0.0
  %1555 = vmatpush1.msra.mxu0 0.0
  %1556 = vmatprep.subr.mxu0 0.0
  %1557 = vmatpush1.msra.mxu0 0.0
  %1558 = vmatprep.subr.mxu0 0.0
  %1559 = vmatpush1.msra.mxu0 0.0
  %1560 = vmatprep.subr.mxu0 0.0
  %1561 = vmatpush1.msra.mxu0 0.0
  %1562 = vmatprep.subr.mxu0 0.0
  %1563 = vmatpush1.msra.mxu0 0.0
  %1564 = vmatprep.mubr.f32.mxu0 0.0
  %1565 = vmatmul.mubr.f32.gmra.mrb[0].mxu0 %v617
  %v1566 = vpop.f32.mrb[0].mxu0
  %v1567 = vadd.f32 0.0, %v1566
  %v1568 = vpop.f32.mrb[0].mxu0
  %1569 = vdwg.mxu0
  %1571 = vrot.lane.b32.xlu0 %v1567, 80
  %v1572 = vpop.permute.xlu0 %1571
  %vm1574 = vcmask 781952
  %1575 = vst.msk [vmem:[%s6] sm:$0xf] %vm1574, %v1572
  %vm1576 = vcmp.eq.s32.totalorder %v478, 6
  %vm1577 = vcmp.eq.s32.totalorder %v479, 6
  %vm1578 = vcmp.eq.s32.totalorder %v480, 6
  %vm1579 = vcmp.eq.s32.totalorder %v481, 6
  %v1580 = vsel %vm1576, %v486, 0.0
  %v1581 = vsel %vm1577, %v487, 0.0
  %v1582 = vsel %vm1578, %v488, 0.0
  %v1583 = vsel %vm1579, %v489, 0.0
  %v1584 = vsel %vm1399, %v490, 0.0
  %v1585 = vsel %vm1400, %v491, 0.0
  %v1586 = vsel %vm1401, %v492, 0.0
  %v1587 = vsel %vm1402, %v493, 0.0
  %v1588 = vadd.f32 %v1580, %v1584
  %v1589 = vadd.f32 %v1581, %v1585
  %v1590 = vadd.f32 %v1582, %v1586
  %v1591 = vadd.f32 %v1583, %v1587
  %1592 = vmatprep.subr.mxu0 0.0
  %1593 = vmatpush1.msra.mxu0 %v494
  %1594 = vmatprep.subr.mxu0 0.0
  %1595 = vmatpush1.msra.mxu0 %v495
  %1596 = vmatprep.subr.mxu0 0.0
  %1597 = vmatpush1.msra.mxu0 %v496
  %1598 = vmatprep.subr.mxu0 0.0
  %1599 = vmatpush1.msra.mxu0 %v497
  %1600 = vmatprep.subr.mxu0 0.0
  %1601 = vmatpush1.msra.mxu0 %v498
  %1602 = vmatprep.subr.mxu0 0.0
  %1603 = vmatpush1.msra.mxu0 %v499
  %1604 = vmatprep.subr.mxu0 0.0
  %1605 = vmatpush1.msra.mxu0 %v500
  %1606 = vmatprep.subr.mxu0 0.0
  %1607 = vmatpush1.msra.mxu0 %v501
  %1608 = vmatprep.subr.mxu0 0.0
  %1609 = vmatpush1.msra.mxu0 %v502
  %1610 = vmatprep.subr.mxu0 0.0
  %1611 = vmatpush1.msra.mxu0 %v503
  %1612 = vmatprep.subr.mxu0 0.0
  %1613 = vmatpush1.msra.mxu0 %v504
  %1614 = vmatprep.subr.mxu0 0.0
  %1615 = vmatpush1.msra.mxu0 %v505
  %1616 = vmatprep.subr.mxu0 0.0
  %1617 = vmatpush1.msra.mxu0 %v506
  %1618 = vmatprep.subr.mxu0 0.0
  %1619 = vmatpush1.msra.mxu0 %v507
  %1620 = vmatprep.subr.mxu0 0.0
  %1621 = vmatpush1.msra.mxu0 %v508
  %1622 = vmatprep.subr.mxu0 0.0
  %1623 = vmatpush1.msra.mxu0 %v509
  %1624 = vmatprep.subr.mxu0 0.0
  %1625 = vmatpush1.msra.mxu0 0.0
  %1626 = vmatprep.subr.mxu0 0.0
  %1627 = vmatpush1.msra.mxu0 0.0
  %1628 = vmatprep.subr.mxu0 0.0
  %1629 = vmatpush1.msra.mxu0 0.0
  %1630 = vmatprep.subr.mxu0 0.0
  %1631 = vmatpush1.msra.mxu0 0.0
  %1632 = vmatprep.subr.mxu0 0.0
  %1633 = vmatpush1.msra.mxu0 0.0
  %1634 = vmatprep.subr.mxu0 0.0
  %1635 = vmatpush1.msra.mxu0 0.0
  %1636 = vmatprep.subr.mxu0 0.0
  %1637 = vmatpush1.msra.mxu0 0.0
  %1638 = vmatprep.subr.mxu0 0.0
  %1639 = vmatpush1.msra.mxu0 0.0
  %1640 = vmatprep.subr.mxu0 0.0
  %1641 = vmatpush1.msra.mxu0 0.0
  %1642 = vmatprep.subr.mxu0 0.0
  %1643 = vmatpush1.msra.mxu0 0.0
  %1644 = vmatprep.subr.mxu0 0.0
  %1645 = vmatpush1.msra.mxu0 0.0
  %1646 = vmatprep.subr.mxu0 0.0
  %1647 = vmatpush1.msra.mxu0 0.0
  %1648 = vmatprep.subr.mxu0 0.0
  %1649 = vmatpush1.msra.mxu0 0.0
  %1650 = vmatprep.subr.mxu0 0.0
  %1651 = vmatpush1.msra.mxu0 0.0
  %1652 = vmatprep.subr.mxu0 0.0
  %1653 = vmatpush1.msra.mxu0 0.0
  %1654 = vmatprep.subr.mxu0 0.0
  %1655 = vmatpush1.msra.mxu0 0.0
  %1656 = vmatprep.mubr.f32.mxu0 0.0
  %1657 = vmatmul.mubr.f32.gmra.mrb[0].mxu0 %v1588
  %v1658 = vpop.f32.mrb[0].mxu0
  %v1659 = vadd.f32 0.0, %v1658
  %v1660 = vpop.f32.mrb[0].mxu0
  %1661 = vmatprep.mubr.f32.mxu0 0.0
  %1662 = vmatmul.mubr.f32.gmra.mrb[0].mxu0 %v1589
  %v1663 = vpop.f32.mrb[0].mxu0
  %v1664 = vadd.f32 0.0, %v1663
  %v1665 = vpop.f32.mrb[0].mxu0
  %1666 = vmatprep.mubr.f32.mxu0 0.0
  %1667 = vmatmul.mubr.f32.gmra.mrb[0].mxu0 %v1590
  %v1668 = vpop.f32.mrb[0].mxu0
  %v1669 = vadd.f32 0.0, %v1668
  %v1670 = vpop.f32.mrb[0].mxu0
  %1671 = vmatprep.mubr.f32.mxu0 0.0
  %1672 = vmatmul.mubr.f32.gmra.mrb[0].mxu0 %v1591
  %v1673 = vpop.f32.mrb[0].mxu0
  %v1674 = vadd.f32 0.0, %v1673
  %v1675 = vpop.f32.mrb[0].mxu0
  %1676 = vdwg.mxu0
  %1677 = vmatprep.subr.mxu0 0.0
  %1678 = vmatpush1.msra.mxu0 %v1659
  %1679 = vmatprep.subr.mxu0 0.0
  %1680 = vmatpush1.msra.mxu0 %v1664
  %1681 = vmatprep.subr.mxu0 0.0
  %1682 = vmatpush1.msra.mxu0 %v1669
  %1683 = vmatprep.subr.mxu0 0.0
  %1684 = vmatpush1.msra.mxu0 %v1674
  %1685 = vmatprep.subr.mxu0 0.0
  %1686 = vmatpush1.msra.mxu0 0.0
  %1687 = vmatprep.subr.mxu0 0.0
  %1688 = vmatpush1.msra.mxu0 0.0
  %1689 = vmatprep.subr.mxu0 0.0
  %1690 = vmatpush1.msra.mxu0 0.0
  %1691 = vmatprep.subr.mxu0 0.0
  %1692 = vmatpush1.msra.mxu0 0.0
  %1693 = vmatprep.subr.mxu0 0.0
  %1694 = vmatpush1.msra.mxu0 0.0
  %1695 = vmatprep.subr.mxu0 0.0
  %1696 = vmatpush1.msra.mxu0 0.0
  %1697 = vmatprep.subr.mxu0 0.0
  %1698 = vmatpush1.msra.mxu0 0.0
  %1699 = vmatprep.subr.mxu0 0.0
  %1700 = vmatpush1.msra.mxu0 0.0
  %1701 = vmatprep.subr.mxu0 0.0
  %1702 = vmatpush1.msra.mxu0 0.0
  %1703 = vmatprep.subr.mxu0 0.0
  %1704 = vmatpush1.msra.mxu0 0.0
  %1705 = vmatprep.subr.mxu0 0.0
  %1706 = vmatpush1.msra.mxu0 0.0
  %1707 = vmatprep.subr.mxu0 0.0
  %1708 = vmatpush1.msra.mxu0 0.0
  %1709 = vmatprep.subr.mxu0 0.0
  %1710 = vmatpush1.msra.mxu0 0.0
  %1711 = vmatprep.subr.mxu0 0.0
  %1712 = vmatpush1.msra.mxu0 0.0
  %1713 = vmatprep.subr.mxu0 0.0
  %1714 = vmatpush1.msra.mxu0 0.0
  %1715 = vmatprep.subr.mxu0 0.0
  %1716 = vmatpush1.msra.mxu0 0.0
  %1717 = vmatprep.subr.mxu0 0.0
  %1718 = vmatpush1.msra.mxu0 0.0
  %1719 = vmatprep.subr.mxu0 0.0
  %1720 = vmatpush1.msra.mxu0 0.0
  %1721 = vmatprep.subr.mxu0 0.0
  %1722 = vmatpush1.msra.mxu0 0.0
  %1723 = vmatprep.subr.mxu0 0.0
  %1724 = vmatpush1.msra.mxu0 0.0
  %1725 = vmatprep.subr.mxu0 0.0
  %1726 = vmatpush1.msra.mxu0 0.0
  %1727 = vmatprep.subr.mxu0 0.0
  %1728 = vmatpush1.msra.mxu0 0.0
  %1729 = vmatprep.subr.mxu0 0.0
  %1730 = vmatpush1.msra.mxu0 0.0
  %1731 = vmatprep.subr.mxu0 0.0
  %1732 = vmatpush1.msra.mxu0 0.0
  %1733 = vmatprep.subr.mxu0 0.0
  %1734 = vmatpush1.msra.mxu0 0.0
  %1735 = vmatprep.subr.mxu0 0.0
  %1736 = vmatpush1.msra.mxu0 0.0
  %1737 = vmatprep.subr.mxu0 0.0
  %1738 = vmatpush1.msra.mxu0 0.0
  %1739 = vmatprep.subr.mxu0 0.0
  %1740 = vmatpush1.msra.mxu0 0.0
  %1741 = vmatprep.mubr.f32.mxu0 0.0
  %1742 = vmatmul.mubr.f32.gmra.mrb[0].mxu0 %v617
  %v1743 = vpop.f32.mrb[0].mxu0
  %v1744 = vadd.f32 0.0, %v1743
  %v1745 = vpop.f32.mrb[0].mxu0
  %1746 = vdwg.mxu0
  %1748 = vrot.lane.b32.xlu0 %v1744, 96
  %v1749 = vpop.permute.xlu0 %1748
  %vm1751 = vcmask 913152
  %1752 = vst.msk [vmem:[%s6] sm:$0xf] %vm1751, %v1749
  %v1753 = vsel %vm511, %v486, 0.0
  %v1754 = vsel %vm512, %v487, 0.0
  %v1755 = vsel %vm513, %v488, 0.0
  %v1756 = vsel %vm514, %v489, 0.0
  %v1757 = vsel %vm1576, %v490, 0.0
  %v1758 = vsel %vm1577, %v491, 0.0
  %v1759 = vsel %vm1578, %v492, 0.0
  %v1760 = vsel %vm1579, %v493, 0.0
  %v1761 = vadd.f32 %v1753, %v1757
  %v1762 = vadd.f32 %v1754, %v1758
  %v1763 = vadd.f32 %v1755, %v1759
  %v1764 = vadd.f32 %v1756, %v1760
  %1765 = vmatprep.subr.mxu0 0.0
  %1766 = vmatpush1.msra.mxu0 %v494
  %1767 = vmatprep.subr.mxu0 0.0
  %1768 = vmatpush1.msra.mxu0 %v495
  %1769 = vmatprep.subr.mxu0 0.0
  %1770 = vmatpush1.msra.mxu0 %v496
  %1771 = vmatprep.subr.mxu0 0.0
  %1772 = vmatpush1.msra.mxu0 %v497
  %1773 = vmatprep.subr.mxu0 0.0
  %1774 = vmatpush1.msra.mxu0 %v498
  %1775 = vmatprep.subr.mxu0 0.0
  %1776 = vmatpush1.msra.mxu0 %v499
  %1777 = vmatprep.subr.mxu0 0.0
  %1778 = vmatpush1.msra.mxu0 %v500
  %1779 = vmatprep.subr.mxu0 0.0
  %1780 = vmatpush1.msra.mxu0 %v501
  %1781 = vmatprep.subr.mxu0 0.0
  %1782 = vmatpush1.msra.mxu0 %v502
  %1783 = vmatprep.subr.mxu0 0.0
  %1784 = vmatpush1.msra.mxu0 %v503
  %1785 = vmatprep.subr.mxu0 0.0
  %1786 = vmatpush1.msra.mxu0 %v504
  %1787 = vmatprep.subr.mxu0 0.0
  %1788 = vmatpush1.msra.mxu0 %v505
  %1789 = vmatprep.subr.mxu0 0.0
  %1790 = vmatpush1.msra.mxu0 %v506
  %1791 = vmatprep.subr.mxu0 0.0
  %1792 = vmatpush1.msra.mxu0 %v507
  %1793 = vmatprep.subr.mxu0 0.0
  %1794 = vmatpush1.msra.mxu0 %v508
  %1795 = vmatprep.subr.mxu0 0.0
  %1796 = vmatpush1.msra.mxu0 %v509
  %1797 = vmatprep.subr.mxu0 0.0
  %1798 = vmatpush1.msra.mxu0 0.0
  %1799 = vmatprep.subr.mxu0 0.0
  %1800 = vmatpush1.msra.mxu0 0.0
  %1801 = vmatprep.subr.mxu0 0.0
  %1802 = vmatpush1.msra.mxu0 0.0
  %1803 = vmatprep.subr.mxu0 0.0
  %1804 = vmatpush1.msra.mxu0 0.0
  %1805 = vmatprep.subr.mxu0 0.0
  %1806 = vmatpush1.msra.mxu0 0.0
  %1807 = vmatprep.subr.mxu0 0.0
  %1808 = vmatpush1.msra.mxu0 0.0
  %1809 = vmatprep.subr.mxu0 0.0
  %1810 = vmatpush1.msra.mxu0 0.0
  %1811 = vmatprep.subr.mxu0 0.0
  %1812 = vmatpush1.msra.mxu0 0.0
  %1813 = vmatprep.subr.mxu0 0.0
  %1814 = vmatpush1.msra.mxu0 0.0
  %1815 = vmatprep.subr.mxu0 0.0
  %1816 = vmatpush1.msra.mxu0 0.0
  %1817 = vmatprep.subr.mxu0 0.0
  %1818 = vmatpush1.msra.mxu0 0.0
  %1819 = vmatprep.subr.mxu0 0.0
  %1820 = vmatpush1.msra.mxu0 0.0
  %1821 = vmatprep.subr.mxu0 0.0
  %1822 = vmatpush1.msra.mxu0 0.0
  %1823 = vmatprep.subr.mxu0 0.0
  %1824 = vmatpush1.msra.mxu0 0.0
  %1825 = vmatprep.subr.mxu0 0.0
  %1826 = vmatpush1.msra.mxu0 0.0
  %1827 = vmatprep.subr.mxu0 0.0
  %1828 = vmatpush1.msra.mxu0 0.0
  %1829 = vmatprep.mubr.f32.mxu0 0.0
  %1830 = vmatmul.mubr.f32.gmra.mrb[0].mxu0 %v1761
  %v1831 = vpop.f32.mrb[0].mxu0
  %v1832 = vadd.f32 0.0, %v1831
  %v1833 = vpop.f32.mrb[0].mxu0
  %1834 = vmatprep.mubr.f32.mxu0 0.0
  %1835 = vmatmul.mubr.f32.gmra.mrb[0].mxu0 %v1762
  %v1836 = vpop.f32.mrb[0].mxu0
  %v1837 = vadd.f32 0.0, %v1836
  %v1838 = vpop.f32.mrb[0].mxu0
  %1839 = vmatprep.mubr.f32.mxu0 0.0
  %1840 = vmatmul.mubr.f32.gmra.mrb[0].mxu0 %v1763
  %v1841 = vpop.f32.mrb[0].mxu0
  %v1842 = vadd.f32 0.0, %v1841
  %v1843 = vpop.f32.mrb[0].mxu0
  %1844 = vmatprep.mubr.f32.mxu0 0.0
  %1845 = vmatmul.mubr.f32.gmra.mrb[0].mxu0 %v1764
  %v1846 = vpop.f32.mrb[0].mxu0
  %v1847 = vadd.f32 0.0, %v1846
  %v1848 = vpop.f32.mrb[0].mxu0
  %1849 = vdwg.mxu0
  %1850 = vmatprep.subr.mxu0 0.0
  %1851 = vmatpush1.msra.mxu0 %v1832
  %1852 = vmatprep.subr.mxu0 0.0
  %1853 = vmatpush1.msra.mxu0 %v1837
  %1854 = vmatprep.subr.mxu0 0.0
  %1855 = vmatpush1.msra.mxu0 %v1842
  %1856 = vmatprep.subr.mxu0 0.0
  %1857 = vmatpush1.msra.mxu0 %v1847
  %1858 = vmatprep.subr.mxu0 0.0
  %1859 = vmatpush1.msra.mxu0 0.0
  %1860 = vmatprep.subr.mxu0 0.0
  %1861 = vmatpush1.msra.mxu0 0.0
  %1862 = vmatprep.subr.mxu0 0.0
  %1863 = vmatpush1.msra.mxu0 0.0
  %1864 = vmatprep.subr.mxu0 0.0
  %1865 = vmatpush1.msra.mxu0 0.0
  %1866 = vmatprep.subr.mxu0 0.0
  %1867 = vmatpush1.msra.mxu0 0.0
  %1868 = vmatprep.subr.mxu0 0.0
  %1869 = vmatpush1.msra.mxu0 0.0
  %1870 = vmatprep.subr.mxu0 0.0
  %1871 = vmatpush1.msra.mxu0 0.0
  %1872 = vmatprep.subr.mxu0 0.0
  %1873 = vmatpush1.msra.mxu0 0.0
  %1874 = vmatprep.subr.mxu0 0.0
  %1875 = vmatpush1.msra.mxu0 0.0
  %1876 = vmatprep.subr.mxu0 0.0
  %1877 = vmatpush1.msra.mxu0 0.0
  %1878 = vmatprep.subr.mxu0 0.0
  %1879 = vmatpush1.msra.mxu0 0.0
  %1880 = vmatprep.subr.mxu0 0.0
  %1881 = vmatpush1.msra.mxu0 0.0
  %1882 = vmatprep.subr.mxu0 0.0
  %1883 = vmatpush1.msra.mxu0 0.0
  %1884 = vmatprep.subr.mxu0 0.0
  %1885 = vmatpush1.msra.mxu0 0.0
  %1886 = vmatprep.subr.mxu0 0.0
  %1887 = vmatpush1.msra.mxu0 0.0
  %1888 = vmatprep.subr.mxu0 0.0
  %1889 = vmatpush1.msra.mxu0 0.0
  %1890 = vmatprep.subr.mxu0 0.0
  %1891 = vmatpush1.msra.mxu0 0.0
  %1892 = vmatprep.subr.mxu0 0.0
  %1893 = vmatpush1.msra.mxu0 0.0
  %1894 = vmatprep.subr.mxu0 0.0
  %1895 = vmatpush1.msra.mxu0 0.0
  %1896 = vmatprep.subr.mxu0 0.0
  %1897 = vmatpush1.msra.mxu0 0.0
  %1898 = vmatprep.subr.mxu0 0.0
  %1899 = vmatpush1.msra.mxu0 0.0
  %1900 = vmatprep.subr.mxu0 0.0
  %1901 = vmatpush1.msra.mxu0 0.0
  %1902 = vmatprep.subr.mxu0 0.0
  %1903 = vmatpush1.msra.mxu0 0.0
  %1904 = vmatprep.subr.mxu0 0.0
  %1905 = vmatpush1.msra.mxu0 0.0
  %1906 = vmatprep.subr.mxu0 0.0
  %1907 = vmatpush1.msra.mxu0 0.0
  %1908 = vmatprep.subr.mxu0 0.0
  %1909 = vmatpush1.msra.mxu0 0.0
  %1910 = vmatprep.subr.mxu0 0.0
  %1911 = vmatpush1.msra.mxu0 0.0
  %1912 = vmatprep.subr.mxu0 0.0
  %1913 = vmatpush1.msra.mxu0 0.0
  %1914 = vmatprep.mubr.f32.mxu0 0.0
  %1915 = vmatmul.mubr.f32.gmra.mrb[0].mxu0 %v617
  %v1916 = vpop.f32.mrb[0].mxu0
  %v1917 = vadd.f32 0.0, %v1916
  %v1918 = vpop.f32.mrb[0].mxu0
  %1919 = vdwg.mxu0
  %1921 = vrot.lane.b32.xlu0 %v1917, 112
  %v1922 = vpop.permute.xlu0 %1921
  %vm1924 = vcmask 1044352
  %1925 = vst.msk [vmem:[%s6] sm:$0xf] %vm1924, %v1922
  // Predicated region
  $region26: #{siftnet_forward.2} parent=0 // pred_check
    _
  $region27: #{siftnet_forward.2} parent=0 // pred_check_branch
    %1927 = sbr.rel (0) target = $region29
  $region28: #{siftnet_forward.2} parent=0 // pred_region
    _
  $region29: #{siftnet_forward.2} parent=0 // pred_fallthru
    _
  // Predicated region
  $region30: #{siftnet_forward.2} parent=0 // pred_check
    _
  $region31: #{siftnet_forward.2} parent=0 // pred_check_branch
    %1929 = sbr.rel (0) target = $region33
  $region32: #{siftnet_forward.2} parent=0 // pred_region
    _
  $region33: #{siftnet_forward.2} parent=0 // pred_fallthru
    _

</llo_original>
